<compile_context>
chip_gen: v7x
topology: tpu7x:2x2x1
jax: 0.10.0
libtpu: 0.0.40
codegen_flags: <defaults>
</compile_context>

<pallas_src>
import math
import functools

import jax
import jax.numpy as jnp
from jax import lax
from jax.experimental import pallas as pl
from jax.experimental.pallas import tpu as pltpu


# ----------------------------- module hyper-parameter logic (ported from spec) ---------------

def factorization(num):
    factor = []
    while num > 1:
        for i in range(num - 1):
            k = i + 2
            if num % k == 0:
                factor.append(k)
        num = int(num / k)
        break
    return factor


def max_lower_k(factor, k=10):
    for i, v in enumerate(factor):
        if v >= k:
            break
    return factor[i - 1]


def heads_for_planes(planes):
    return 1 if planes < 64 else max_lower_k(factorization(planes), 10)


# ----------------------------- in-kernel math helpers -----------------------------

_BF16 = jnp.bfloat16
_NEG = -1e30   # effectively -inf for f32 softmax (exp underflows to exactly 0)


def _layernorm(x, gamma, beta, eps=1e-5):
    mu = jnp.mean(x, axis=-1, keepdims=True)
    var = jnp.mean((x - mu) ** 2, axis=-1, keepdims=True)
    return (x - mu) * lax.rsqrt(var + eps) * gamma + beta


def _gelu_exact(x):
    return 0.5 * x * (1.0 + lax.erf(x * (1.0 / math.sqrt(2.0))))


def _dot_nt(a, b):
    # a (m, k), b (n, k) -> a @ b.T ; bf16 operands, f32 accumulation on the MXU.
    return lax.dot_general(a.astype(_BF16), b.astype(_BF16),
                           (((1,), (1,)), ((), ())),
                           preferred_element_type=jnp.float32)


def _masked_softmax(dots, keep):
    dots = jnp.where(keep, dots, _NEG)
    m = jnp.max(dots, axis=-1, keepdims=True)
    e = jnp.exp(dots - m)
    s = jnp.sum(e, axis=-1, keepdims=True)
    return e * pl.reciprocal(s, approx=True)          # divide -> EUP vrcp


def _attention(q, k, v, keep, heads, dim_head):
    """Masked multi-head attention on an (N, D) head-major tile. No per-head loop."""
    n, d = q.shape
    if heads == 1:
        attn = _masked_softmax(_dot_nt(q, k), keep)                     # (N, N)
        return jnp.dot(attn.astype(_BF16), v.astype(_BF16),
                       preferred_element_type=jnp.float32)              # (N, D)
    # General path (planes >= 64): heads as a dot_general batch dim ('hnd,hmd->hnm' etc.).
    q3 = q.reshape(n, heads, dim_head)
    k3 = k.reshape(n, heads, dim_head)
    v3 = v.reshape(n, heads, dim_head)
    dots = lax.dot_general(q3.astype(_BF16), k3.astype(_BF16),
                           (((2,), (2,)), ((1,), (1,))),
                           preferred_element_type=jnp.float32)          # (H, N, N)
    attn = _masked_softmax(dots, keep[None])
    out = lax.dot_general(attn.astype(_BF16), v3.astype(_BF16),
                          (((2,), (0,)), ((0,), (1,))),
                          preferred_element_type=jnp.float32)           # (H, N, dh)
    return jnp.transpose(out, (1, 0, 2)).reshape(n, d)                  # 'h n d -> n (h d)'


def _branch(x, qkv, keep, p, heads, dim_head, scale):
    """One TransformerLayer (masked attention + FF, post-residual LayerNorms) + sigmoid."""
    d = x.shape[-1]
    g1, b1, wff1, bff1, wff2, bff2, g2, b2 = p
    q = qkv[:, 0:d] * scale            # reference scales q by 1/sqrt(x.shape[-1])
    k = qkv[:, d:2 * d]
    v = qkv[:, 2 * d:3 * d]
    att = _attention(q, k, v, keep, heads, dim_head)
    x1 = _layernorm(x + att, g1, b1)
    h = _gelu_exact(jnp.dot(x1.astype(_BF16), wff1,
                            preferred_element_type=jnp.float32) + bff1)
    ff = jnp.dot(h.astype(_BF16), wff2, preferred_element_type=jnp.float32) + bff2
    x2 = _layernorm(x1 + ff, g2, b2)
    return jax.nn.sigmoid(x2)


def _matching_kernel(x_ref, wqkv_ref, bqkv_ref, *refs, heads, dim_head):
    # refs = 8 params (branch 1) + 8 params (branch 2) + out_ref
    p1 = [r[...] for r in refs[0:8]]
    p2 = [r[...] for r in refs[8:16]]
    out_ref = refs[16]

    x = x_ref[...]                     # (N, D) f32 (batch dim squeezed by BlockSpec)
    n, d = x.shape
    scale = 1.0 / math.sqrt(d)

    # Fused QKV projection for BOTH branches: one (N, D) x (D, 6D) bf16 matmul, f32 accum.
    qkv = jnp.dot(x.astype(_BF16), wqkv_ref[...],
                  preferred_element_type=jnp.float32) + bqkv_ref[...]   # (N, 6D)

    # Keep-masks (reference adds -inf masks before softmax):
    #   transformer1: triu(-inf, diag=1)  -> keep j <= i
    #   transformer2: tril(-inf, diag=-1) -> keep j >= i
    row = lax.broadcasted_iota(jnp.int32, (n, n), 0)
    col = lax.broadcasted_iota(jnp.int32, (n, n), 1)

    td1 = _branch(x, qkv[:, 0:3 * d], col <= row, p1, heads, dim_head, scale)
    td2 = _branch(x, qkv[:, 3 * d:6 * d], col >= row, p2, heads, dim_head, scale)

    out_ref[...] = _dot_nt(td1, td2) * (1.0 / d)       # (N, N) similarity


# ----------------------------- wrapper / glue -----------------------------

def _full_spec(a):
    nd = a.ndim
    return pl.BlockSpec(a.shape, lambda b, _nd=nd: (0,) * _nd)


def matching_fb_pallas(x, wqkv_both, bqkv_both, params1, params2, heads):
    B, N, D = x.shape
    dim_head = D // heads
    flat = [wqkv_both, bqkv_both] + list(params1) + list(params2)
    kernel = functools.partial(_matching_kernel, heads=heads, dim_head=dim_head)
    return pl.pallas_call(
        kernel,
        out_shape=jax.ShapeDtypeStruct((B, N, N), jnp.float32),
        grid=(B,),
        in_specs=[pl.BlockSpec((pl.Squeezed(), N, D), lambda b: (b, 0, 0))]
                + [_full_spec(a) for a in flat],
        out_specs=pl.BlockSpec((pl.Squeezed(), N, N), lambda b: (b, 0, 0)),
        compiler_params=pltpu.CompilerParams(dimension_semantics=("parallel",)),
    )(x, *flat)


# ----------------------------- parameter construction -----------------------------

def init_transformer_params(key, d, heads, scale=0.08):
    """Deterministic synthetic params for one TransformerLayer.

    Returns (raw, wqkv_headmajor, bqkv_headmajor, kernel_params):
      raw: PyTorch-semantics f32 params (for the pure-JAX reference)
      wqkv/bqkv head-major: qkv columns permuted so head index is slow (kernel layout)
      kernel_params: (g1, b1, wff1[bf16], bff1, wff2[bf16], bff2, g2, b2), vectors as (1, D)
    """
    dim_head = d // heads
    ks = jax.random.split(key, 10)
    f32 = jnp.float32
    wqkv = jax.random.normal(ks[0], (d, 3 * d), f32) * scale
    bqkv = jax.random.normal(ks[1], (3 * d,), f32) * scale
    wff1 = jax.random.normal(ks[2], (d, d), f32) * scale
    bff1 = jax.random.normal(ks[3], (d,), f32) * scale
    wff2 = jax.random.normal(ks[4], (d, d), f32) * scale
    bff2 = jax.random.normal(ks[5], (d,), f32) * scale
    g1 = 1.0 + jax.random.normal(ks[6], (d,), f32) * 0.02
    b1 = jax.random.normal(ks[7], (d,), f32) * 0.02
    g2 = 1.0 + jax.random.normal(ks[8], (d,), f32) * 0.02
    b2 = jax.random.normal(ks[9], (d,), f32) * 0.02

    raw = dict(wqkv=wqkv, bqkv=bqkv, g1=g1, b1=b1, wff1=wff1, bff1=bff1,
               wff2=wff2, bff2=bff2, g2=g2, b2=b2)

    # kernel column hh*dim_head + dd  <-  pytorch column dd*heads + hh  ('(d h)' packing)
    perm = jnp.array([dd * heads + hh for hh in range(heads) for dd in range(dim_head)],
                     dtype=jnp.int32)
    wq, wk, wv = wqkv[:, :d], wqkv[:, d:2 * d], wqkv[:, 2 * d:]
    bq, bk, bv = bqkv[:d], bqkv[d:2 * d], bqkv[2 * d:]
    wqkv_hm = jnp.concatenate([wq[:, perm], wk[:, perm], wv[:, perm]], axis=-1)
    bqkv_hm = jnp.concatenate([bq[perm], bk[perm], bv[perm]])

    kparams = (g1[None, :], b1[None, :],
               wff1.astype(jnp.bfloat16), bff1[None, :],
               wff2.astype(jnp.bfloat16), bff2[None, :],
               g2[None, :], b2[None, :])
    return raw, wqkv_hm, bqkv_hm, kparams


# ----------------------------- pure-JAX reference (PyTorch semantics, f32) --------------------

def _ref_transformer(x, raw, heads, att_mask):
    b, n, d = x.shape
    dim_head = d // heads
    qkv = x @ raw['wqkv'] + raw['bqkv']
    q, k, v = jnp.split(qkv, 3, axis=-1)

    def rearr(t):  # 'b n (d h) -> b h n d'
        return t.reshape(b, n, dim_head, heads).transpose(0, 3, 1, 2)

    q, k, v = rearr(q), rearr(k), rearr(v)
    q = q / math.sqrt(d)
    dots = jnp.einsum('bhid,bhjd->bhij', q, k) + att_mask
    attn = jax.nn.softmax(dots, axis=-1)
    out = jnp.einsum('bhij,bhjd->bhid', attn, v)
    out = out.transpose(0, 2, 1, 3).reshape(b, n, d)   # 'b h n d -> b n (h d)'

    def ln(y, g, be):
        mu = jnp.mean(y, axis=-1, keepdims=True)
        var = jnp.mean((y - mu) ** 2, axis=-1, keepdims=True)
        return (y - mu) / jnp.sqrt(var + 1e-5) * g + be

    x1 = ln(x + out, raw['g1'], raw['b1'])
    h = jax.nn.gelu(x1 @ raw['wff1'] + raw['bff1'], approximate=False)
    ff = h @ raw['wff2'] + raw['bff2']
    return ln(x1 + ff, raw['g2'], raw['b2'])


def _ref_matching_fb(x, raw1, raw2, heads):
    n = x.shape[1]
    neg = jnp.full((n, n), -jnp.inf, jnp.float32)
    mask1 = jnp.triu(neg, k=1)     # masks j > i  (transformer1)
    mask2 = jnp.tril(neg, k=-1)    # masks j < i  (transformer2)
    td1 = jax.nn.sigmoid(_ref_transformer(x, raw1, heads, mask1))
    td2 = jax.nn.sigmoid(_ref_transformer(x, raw2, heads, mask2))
    return jnp.einsum('bnd,bmd->bnm', td1, td2) / td1.shape[-1]


# ----------------------------- main -----------------------------

if __name__ == "__main__":
    B, N, PLANES = 2, 8, 32
    HEADS = heads_for_planes(PLANES)    # planes < 64 -> the module forces heads = 1

    key = jax.random.PRNGKey(0)
    kx, k1, k2 = jax.random.split(key, 3)
    x = jax.random.normal(kx, (B, N, PLANES), jnp.float32)

    raw1, wqkv1, bqkv1, kp1 = init_transformer_params(k1, PLANES, HEADS)
    raw2, wqkv2, bqkv2, kp2 = init_transformer_params(k2, PLANES, HEADS)

    # Fuse both branches' QKV weights (head-major) into one bf16 (D, 6D) matrix.
    wqkv_both = jnp.concatenate([wqkv1, wqkv2], axis=-1).astype(jnp.bfloat16)
    bqkv_both = jnp.concatenate([bqkv1, bqkv2])[None, :]            # (1, 6D) f32

    out = matching_fb_pallas(x, wqkv_both, bqkv_both, kp1, kp2, HEADS)
    out = jax.block_until_ready(out)

    ref = _ref_matching_fb(x, raw1, raw2, HEADS)
    assert out.shape == (B, N, N)
    # Tolerance loosened vs f32 because matmul operands are bf16 (f32 accumulation).
    assert jnp.allclose(out, ref, atol=3e-2, rtol=3e-2), "Pallas kernel mismatch vs reference"

    print("KERNEL_OK")
</pallas_src>

<mosaic_0001>
module attributes {stable_mosaic.version = 11 : i64} {
  func.func @_matching_kernel(%arg0: i32, %arg1: memref<1x8x32xf32, #tpu.memory_space<vmem>>, %arg2: memref<32x192xbf16, #tpu.memory_space<vmem>>, %arg3: memref<1x192xf32, #tpu.memory_space<vmem>>, %arg4: memref<1x32xf32, #tpu.memory_space<vmem>>, %arg5: memref<1x32xf32, #tpu.memory_space<vmem>>, %arg6: memref<32x32xbf16, #tpu.memory_space<vmem>>, %arg7: memref<1x32xf32, #tpu.memory_space<vmem>>, %arg8: memref<32x32xbf16, #tpu.memory_space<vmem>>, %arg9: memref<1x32xf32, #tpu.memory_space<vmem>>, %arg10: memref<1x32xf32, #tpu.memory_space<vmem>>, %arg11: memref<1x32xf32, #tpu.memory_space<vmem>>, %arg12: memref<1x32xf32, #tpu.memory_space<vmem>>, %arg13: memref<1x32xf32, #tpu.memory_space<vmem>>, %arg14: memref<32x32xbf16, #tpu.memory_space<vmem>>, %arg15: memref<1x32xf32, #tpu.memory_space<vmem>>, %arg16: memref<32x32xbf16, #tpu.memory_space<vmem>>, %arg17: memref<1x32xf32, #tpu.memory_space<vmem>>, %arg18: memref<1x32xf32, #tpu.memory_space<vmem>>, %arg19: memref<1x32xf32, #tpu.memory_space<vmem>>, %arg20: memref<1x8x8xf32, #tpu.memory_space<vmem>>) attributes {dimension_semantics = [#tpu.dimension_semantics<parallel>], iteration_bounds = array<i64: 2>, scalar_prefetch = 0 : i64, scratch_operands = 0 : i64, tpu.core_type = #tpu.core_type<tc>, window_params = [{transform_indices = @transform_0, window_bounds = array<i64: 1, 8, 32>}, {pipeline_mode = #tpu.pipeline_mode<synchronous>, transform_indices = @transform_1, window_bounds = array<i64: 32, 192>}, {pipeline_mode = #tpu.pipeline_mode<synchronous>, transform_indices = @transform_2, window_bounds = array<i64: 1, 192>}, {pipeline_mode = #tpu.pipeline_mode<synchronous>, transform_indices = @transform_3, window_bounds = array<i64: 1, 32>}, {pipeline_mode = #tpu.pipeline_mode<synchronous>, transform_indices = @transform_4, window_bounds = array<i64: 1, 32>}, {pipeline_mode = #tpu.pipeline_mode<synchronous>, transform_indices = @transform_5, window_bounds = array<i64: 32, 32>}, {pipeline_mode = #tpu.pipeline_mode<synchronous>, transform_indices = @transform_6, window_bounds = array<i64: 1, 32>}, {pipeline_mode = #tpu.pipeline_mode<synchronous>, transform_indices = @transform_7, window_bounds = array<i64: 32, 32>}, {pipeline_mode = #tpu.pipeline_mode<synchronous>, transform_indices = @transform_8, window_bounds = array<i64: 1, 32>}, {pipeline_mode = #tpu.pipeline_mode<synchronous>, transform_indices = @transform_9, window_bounds = array<i64: 1, 32>}, {pipeline_mode = #tpu.pipeline_mode<synchronous>, transform_indices = @transform_10, window_bounds = array<i64: 1, 32>}, {pipeline_mode = #tpu.pipeline_mode<synchronous>, transform_indices = @transform_11, window_bounds = array<i64: 1, 32>}, {pipeline_mode = #tpu.pipeline_mode<synchronous>, transform_indices = @transform_12, window_bounds = array<i64: 1, 32>}, {pipeline_mode = #tpu.pipeline_mode<synchronous>, transform_indices = @transform_13, window_bounds = array<i64: 32, 32>}, {pipeline_mode = #tpu.pipeline_mode<synchronous>, transform_indices = @transform_14, window_bounds = array<i64: 1, 32>}, {pipeline_mode = #tpu.pipeline_mode<synchronous>, transform_indices = @transform_15, window_bounds = array<i64: 32, 32>}, {pipeline_mode = #tpu.pipeline_mode<synchronous>, transform_indices = @transform_16, window_bounds = array<i64: 1, 32>}, {pipeline_mode = #tpu.pipeline_mode<synchronous>, transform_indices = @transform_17, window_bounds = array<i64: 1, 32>}, {pipeline_mode = #tpu.pipeline_mode<synchronous>, transform_indices = @transform_18, window_bounds = array<i64: 1, 32>}, {transform_indices = @transform_19, window_bounds = array<i64: 1, 8, 8>}]} {
    %c0 = arith.constant 0 : index
    %c0_0 = arith.constant 0 : index
    %0 = vector.load %arg4[%c0, %c0_0] : memref<1x32xf32, #tpu.memory_space<vmem>>, vector<1x32xf32>
    %c0_1 = arith.constant 0 : index
    %c0_2 = arith.constant 0 : index
    %1 = vector.load %arg5[%c0_1, %c0_2] : memref<1x32xf32, #tpu.memory_space<vmem>>, vector<1x32xf32>
    %c0_3 = arith.constant 0 : index
    %c0_4 = arith.constant 0 : index
    %2 = vector.load %arg6[%c0_3, %c0_4] : memref<32x32xbf16, #tpu.memory_space<vmem>>, vector<32x32xbf16>
    %c0_5 = arith.constant 0 : index
    %c0_6 = arith.constant 0 : index
    %3 = vector.load %arg7[%c0_5, %c0_6] : memref<1x32xf32, #tpu.memory_space<vmem>>, vector<1x32xf32>
    %c0_7 = arith.constant 0 : index
    %c0_8 = arith.constant 0 : index
    %4 = vector.load %arg8[%c0_7, %c0_8] : memref<32x32xbf16, #tpu.memory_space<vmem>>, vector<32x32xbf16>
    %c0_9 = arith.constant 0 : index
    %c0_10 = arith.constant 0 : index
    %5 = vector.load %arg9[%c0_9, %c0_10] : memref<1x32xf32, #tpu.memory_space<vmem>>, vector<1x32xf32>
    %c0_11 = arith.constant 0 : index
    %c0_12 = arith.constant 0 : index
    %6 = vector.load %arg10[%c0_11, %c0_12] : memref<1x32xf32, #tpu.memory_space<vmem>>, vector<1x32xf32>
    %c0_13 = arith.constant 0 : index
    %c0_14 = arith.constant 0 : index
    %7 = vector.load %arg11[%c0_13, %c0_14] : memref<1x32xf32, #tpu.memory_space<vmem>>, vector<1x32xf32>
    %c0_15 = arith.constant 0 : index
    %c0_16 = arith.constant 0 : index
    %8 = vector.load %arg12[%c0_15, %c0_16] : memref<1x32xf32, #tpu.memory_space<vmem>>, vector<1x32xf32>
    %c0_17 = arith.constant 0 : index
    %c0_18 = arith.constant 0 : index
    %9 = vector.load %arg13[%c0_17, %c0_18] : memref<1x32xf32, #tpu.memory_space<vmem>>, vector<1x32xf32>
    %c0_19 = arith.constant 0 : index
    %c0_20 = arith.constant 0 : index
    %10 = vector.load %arg14[%c0_19, %c0_20] : memref<32x32xbf16, #tpu.memory_space<vmem>>, vector<32x32xbf16>
    %c0_21 = arith.constant 0 : index
    %c0_22 = arith.constant 0 : index
    %11 = vector.load %arg15[%c0_21, %c0_22] : memref<1x32xf32, #tpu.memory_space<vmem>>, vector<1x32xf32>
    %c0_23 = arith.constant 0 : index
    %c0_24 = arith.constant 0 : index
    %12 = vector.load %arg16[%c0_23, %c0_24] : memref<32x32xbf16, #tpu.memory_space<vmem>>, vector<32x32xbf16>
    %c0_25 = arith.constant 0 : index
    %c0_26 = arith.constant 0 : index
    %13 = vector.load %arg17[%c0_25, %c0_26] : memref<1x32xf32, #tpu.memory_space<vmem>>, vector<1x32xf32>
    %c0_27 = arith.constant 0 : index
    %c0_28 = arith.constant 0 : index
    %14 = vector.load %arg18[%c0_27, %c0_28] : memref<1x32xf32, #tpu.memory_space<vmem>>, vector<1x32xf32>
    %c0_29 = arith.constant 0 : index
    %c0_30 = arith.constant 0 : index
    %15 = vector.load %arg19[%c0_29, %c0_30] : memref<1x32xf32, #tpu.memory_space<vmem>>, vector<1x32xf32>
    %c0_31 = arith.constant 0 : index
    %c0_32 = arith.constant 0 : index
    %c0_33 = arith.constant 0 : index
    %16 = vector.load %arg1[%c0_31, %c0_32, %c0_33] : memref<1x8x32xf32, #tpu.memory_space<vmem>>, vector<1x8x32xf32>
    %17 = vector.shape_cast %16 : vector<1x8x32xf32> to vector<8x32xf32>
    %18 = arith.truncf %17 : vector<8x32xf32> to vector<8x32xbf16>
    %c0_34 = arith.constant 0 : index
    %c0_35 = arith.constant 0 : index
    %19 = vector.load %arg2[%c0_34, %c0_35] : memref<32x192xbf16, #tpu.memory_space<vmem>>, vector<32x192xbf16>
    %cst = arith.constant dense<0.000000e+00> : vector<8x192xf32>
    %20 = tpu.matmul %18, %19, %cst {dimension_numbers = #tpu.dot_dimension_numbers<[1], [0], [0], [1], [0, 0, 1, 1], [], []>} : vector<8x32xbf16>, vector<32x192xbf16>, vector<8x192xf32> -> vector<8x192xf32>
    %c0_36 = arith.constant 0 : index
    %c0_37 = arith.constant 0 : index
    %21 = vector.load %arg3[%c0_36, %c0_37] : memref<1x192xf32, #tpu.memory_space<vmem>>, vector<1x192xf32>
    %22 = vector.broadcast %21 : vector<1x192xf32> to vector<8x192xf32>
    %23 = arith.addf %20, %22 : vector<8x192xf32>
    %24 = tpu.iota {dimensions = array<i32: 0>} : vector<8x8xi32>
    %25 = tpu.iota {dimensions = array<i32: 1>} : vector<8x8xi32>
    %26 = vector.extract_strided_slice %23 {offsets = [0, 0], sizes = [8, 96], strides = [1, 1]} : vector<8x192xf32> to vector<8x96xf32>
    %27 = arith.cmpi sle, %25, %24 : vector<8x8xi32>
    %28 = vector.extract_strided_slice %26 {offsets = [0, 0], sizes = [8, 32], strides = [1, 1]} : vector<8x96xf32> to vector<8x32xf32>
    %cst_38 = arith.constant 0.176776692 : f32
    %29 = vector.broadcast %cst_38 : f32 to vector<8x32xf32>
    %30 = arith.mulf %28, %29 : vector<8x32xf32>
    %31 = vector.extract_strided_slice %26 {offsets = [0, 32], sizes = [8, 32], strides = [1, 1]} : vector<8x96xf32> to vector<8x32xf32>
    %32 = vector.extract_strided_slice %26 {offsets = [0, 64], sizes = [8, 32], strides = [1, 1]} : vector<8x96xf32> to vector<8x32xf32>
    %33 = arith.truncf %30 : vector<8x32xf32> to vector<8x32xbf16>
    %34 = arith.truncf %31 : vector<8x32xf32> to vector<8x32xbf16>
    %cst_39 = arith.constant dense<0.000000e+00> : vector<8x8xf32>
    %35 = tpu.matmul %33, %34, %cst_39 {dimension_numbers = #tpu.dot_dimension_numbers<[1], [1], [0], [0], [0, 0, 1, 0], [], []>} : vector<8x32xbf16>, vector<8x32xbf16>, vector<8x8xf32> -> vector<8x8xf32>
    %cst_40 = arith.constant -1.000000e+30 : f32
    %36 = vector.broadcast %cst_40 : f32 to vector<8x8xf32>
    %37 = arith.select %27, %35, %36 : vector<8x8xi1>, vector<8x8xf32>
    %cst_41 = arith.constant dense<0xFF800000> : vector<8xf32>
    %38 = vector.multi_reduction <maximumf>, %37, %cst_41 [1] : vector<8x8xf32> to vector<8xf32>
    %39 = vector.shape_cast %38 : vector<8xf32> to vector<8x1xf32>
    %40 = vector.broadcast %39 : vector<8x1xf32> to vector<8x8xf32>
    %41 = arith.subf %37, %40 : vector<8x8xf32>
    %42 = math.exp %41 : vector<8x8xf32>
    %cst_42 = arith.constant dense<0.000000e+00> : vector<8xf32>
    %43 = vector.multi_reduction <add>, %42, %cst_42 [1] : vector<8x8xf32> to vector<8xf32>
    %44 = vector.shape_cast %43 : vector<8xf32> to vector<8x1xf32>
    %45 = tpu.reciprocal %44 {approx = true} : vector<8x1xf32> -> vector<8x1xf32>
    %46 = vector.broadcast %45 : vector<8x1xf32> to vector<8x8xf32>
    %47 = arith.mulf %42, %46 : vector<8x8xf32>
    %48 = arith.truncf %47 : vector<8x8xf32> to vector<8x8xbf16>
    %49 = arith.truncf %32 : vector<8x32xf32> to vector<8x32xbf16>
    %cst_43 = arith.constant dense<0.000000e+00> : vector<8x32xf32>
    %50 = tpu.matmul %48, %49, %cst_43 {dimension_numbers = #tpu.dot_dimension_numbers<[1], [0], [0], [1], [0, 0, 1, 1], [], []>} : vector<8x8xbf16>, vector<8x32xbf16>, vector<8x32xf32> -> vector<8x32xf32>
    %51 = arith.addf %17, %50 : vector<8x32xf32>
    %cst_44 = arith.constant dense<0.000000e+00> : vector<8xf32>
    %52 = vector.multi_reduction <add>, %51, %cst_44 [1] : vector<8x32xf32> to vector<8xf32>
    %53 = vector.shape_cast %52 : vector<8xf32> to vector<8x1xf32>
    %cst_45 = arith.constant 3.200000e+01 : f32
    %54 = vector.broadcast %cst_45 : f32 to vector<8x1xf32>
    %55 = arith.divf %53, %54 : vector<8x1xf32>
    %56 = vector.broadcast %55 : vector<8x1xf32> to vector<8x32xf32>
    %57 = arith.subf %51, %56 : vector<8x32xf32>
    %58 = arith.mulf %57, %57 : vector<8x32xf32>
    %cst_46 = arith.constant dense<0.000000e+00> : vector<8xf32>
    %59 = vector.multi_reduction <add>, %58, %cst_46 [1] : vector<8x32xf32> to vector<8xf32>
    %60 = vector.shape_cast %59 : vector<8xf32> to vector<8x1xf32>
    %cst_47 = arith.constant 3.200000e+01 : f32
    %61 = vector.broadcast %cst_47 : f32 to vector<8x1xf32>
    %62 = arith.divf %60, %61 : vector<8x1xf32>
    %63 = vector.broadcast %55 : vector<8x1xf32> to vector<8x32xf32>
    %64 = arith.subf %51, %63 : vector<8x32xf32>
    %cst_48 = arith.constant 9.99999974E-6 : f32
    %65 = vector.broadcast %cst_48 : f32 to vector<8x1xf32>
    %66 = arith.addf %62, %65 : vector<8x1xf32>
    %67 = math.rsqrt %66 : vector<8x1xf32>
    %68 = vector.broadcast %67 : vector<8x1xf32> to vector<8x32xf32>
    %69 = arith.mulf %64, %68 : vector<8x32xf32>
    %70 = vector.broadcast %0 : vector<1x32xf32> to vector<8x32xf32>
    %71 = arith.mulf %69, %70 : vector<8x32xf32>
    %72 = vector.broadcast %1 : vector<1x32xf32> to vector<8x32xf32>
    %73 = arith.addf %71, %72 : vector<8x32xf32>
    %74 = arith.truncf %73 : vector<8x32xf32> to vector<8x32xbf16>
    %cst_49 = arith.constant dense<0.000000e+00> : vector<8x32xf32>
    %75 = tpu.matmul %74, %2, %cst_49 {dimension_numbers = #tpu.dot_dimension_numbers<[1], [0], [0], [1], [0, 0, 1, 1], [], []>} : vector<8x32xbf16>, vector<32x32xbf16>, vector<8x32xf32> -> vector<8x32xf32>
    %76 = vector.broadcast %3 : vector<1x32xf32> to vector<8x32xf32>
    %77 = arith.addf %75, %76 : vector<8x32xf32>
    %cst_50 = arith.constant 5.000000e-01 : f32
    %78 = vector.broadcast %cst_50 : f32 to vector<8x32xf32>
    %79 = arith.mulf %78, %77 : vector<8x32xf32>
    %cst_51 = arith.constant 0.707106769 : f32
    %80 = vector.broadcast %cst_51 : f32 to vector<8x32xf32>
    %81 = arith.mulf %77, %80 : vector<8x32xf32>
    %82 = math.erf %81 : vector<8x32xf32>
    %cst_52 = arith.constant 1.000000e+00 : f32
    %83 = vector.broadcast %cst_52 : f32 to vector<8x32xf32>
    %84 = arith.addf %83, %82 : vector<8x32xf32>
    %85 = arith.mulf %79, %84 : vector<8x32xf32>
    %86 = arith.truncf %85 : vector<8x32xf32> to vector<8x32xbf16>
    %cst_53 = arith.constant dense<0.000000e+00> : vector<8x32xf32>
    %87 = tpu.matmul %86, %4, %cst_53 {dimension_numbers = #tpu.dot_dimension_numbers<[1], [0], [0], [1], [0, 0, 1, 1], [], []>} : vector<8x32xbf16>, vector<32x32xbf16>, vector<8x32xf32> -> vector<8x32xf32>
    %88 = vector.broadcast %5 : vector<1x32xf32> to vector<8x32xf32>
    %89 = arith.addf %87, %88 : vector<8x32xf32>
    %90 = arith.addf %73, %89 : vector<8x32xf32>
    %cst_54 = arith.constant dense<0.000000e+00> : vector<8xf32>
    %91 = vector.multi_reduction <add>, %90, %cst_54 [1] : vector<8x32xf32> to vector<8xf32>
    %92 = vector.shape_cast %91 : vector<8xf32> to vector<8x1xf32>
    %cst_55 = arith.constant 3.200000e+01 : f32
    %93 = vector.broadcast %cst_55 : f32 to vector<8x1xf32>
    %94 = arith.divf %92, %93 : vector<8x1xf32>
    %95 = vector.broadcast %94 : vector<8x1xf32> to vector<8x32xf32>
    %96 = arith.subf %90, %95 : vector<8x32xf32>
    %97 = arith.mulf %96, %96 : vector<8x32xf32>
    %cst_56 = arith.constant dense<0.000000e+00> : vector<8xf32>
    %98 = vector.multi_reduction <add>, %97, %cst_56 [1] : vector<8x32xf32> to vector<8xf32>
    %99 = vector.shape_cast %98 : vector<8xf32> to vector<8x1xf32>
    %cst_57 = arith.constant 3.200000e+01 : f32
    %100 = vector.broadcast %cst_57 : f32 to vector<8x1xf32>
    %101 = arith.divf %99, %100 : vector<8x1xf32>
    %102 = vector.broadcast %94 : vector<8x1xf32> to vector<8x32xf32>
    %103 = arith.subf %90, %102 : vector<8x32xf32>
    %cst_58 = arith.constant 9.99999974E-6 : f32
    %104 = vector.broadcast %cst_58 : f32 to vector<8x1xf32>
    %105 = arith.addf %101, %104 : vector<8x1xf32>
    %106 = math.rsqrt %105 : vector<8x1xf32>
    %107 = vector.broadcast %106 : vector<8x1xf32> to vector<8x32xf32>
    %108 = arith.mulf %103, %107 : vector<8x32xf32>
    %109 = vector.broadcast %6 : vector<1x32xf32> to vector<8x32xf32>
    %110 = arith.mulf %108, %109 : vector<8x32xf32>
    %111 = vector.broadcast %7 : vector<1x32xf32> to vector<8x32xf32>
    %112 = arith.addf %110, %111 : vector<8x32xf32>
    %113 = arith.negf %112 : vector<8x32xf32>
    %114 = math.exp %113 : vector<8x32xf32>
    %cst_59 = arith.constant 1.000000e+00 : f32
    %115 = vector.broadcast %cst_59 : f32 to vector<8x32xf32>
    %116 = arith.addf %115, %114 : vector<8x32xf32>
    %117 = arith.divf %115, %116 : vector<8x32xf32>
    %118 = vector.extract_strided_slice %23 {offsets = [0, 96], sizes = [8, 96], strides = [1, 1]} : vector<8x192xf32> to vector<8x96xf32>
    %119 = arith.cmpi sge, %25, %24 : vector<8x8xi32>
    %120 = vector.extract_strided_slice %118 {offsets = [0, 0], sizes = [8, 32], strides = [1, 1]} : vector<8x96xf32> to vector<8x32xf32>
    %cst_60 = arith.constant 0.176776692 : f32
    %121 = vector.broadcast %cst_60 : f32 to vector<8x32xf32>
    %122 = arith.mulf %120, %121 : vector<8x32xf32>
    %123 = vector.extract_strided_slice %118 {offsets = [0, 32], sizes = [8, 32], strides = [1, 1]} : vector<8x96xf32> to vector<8x32xf32>
    %124 = vector.extract_strided_slice %118 {offsets = [0, 64], sizes = [8, 32], strides = [1, 1]} : vector<8x96xf32> to vector<8x32xf32>
    %125 = arith.truncf %122 : vector<8x32xf32> to vector<8x32xbf16>
    %126 = arith.truncf %123 : vector<8x32xf32> to vector<8x32xbf16>
    %cst_61 = arith.constant dense<0.000000e+00> : vector<8x8xf32>
    %127 = tpu.matmul %125, %126, %cst_61 {dimension_numbers = #tpu.dot_dimension_numbers<[1], [1], [0], [0], [0, 0, 1, 0], [], []>} : vector<8x32xbf16>, vector<8x32xbf16>, vector<8x8xf32> -> vector<8x8xf32>
    %cst_62 = arith.constant -1.000000e+30 : f32
    %128 = vector.broadcast %cst_62 : f32 to vector<8x8xf32>
    %129 = arith.select %119, %127, %128 : vector<8x8xi1>, vector<8x8xf32>
    %cst_63 = arith.constant dense<0xFF800000> : vector<8xf32>
    %130 = vector.multi_reduction <maximumf>, %129, %cst_63 [1] : vector<8x8xf32> to vector<8xf32>
    %131 = vector.shape_cast %130 : vector<8xf32> to vector<8x1xf32>
    %132 = vector.broadcast %131 : vector<8x1xf32> to vector<8x8xf32>
    %133 = arith.subf %129, %132 : vector<8x8xf32>
    %134 = math.exp %133 : vector<8x8xf32>
    %cst_64 = arith.constant dense<0.000000e+00> : vector<8xf32>
    %135 = vector.multi_reduction <add>, %134, %cst_64 [1] : vector<8x8xf32> to vector<8xf32>
    %136 = vector.shape_cast %135 : vector<8xf32> to vector<8x1xf32>
    %137 = tpu.reciprocal %136 {approx = true} : vector<8x1xf32> -> vector<8x1xf32>
    %138 = vector.broadcast %137 : vector<8x1xf32> to vector<8x8xf32>
    %139 = arith.mulf %134, %138 : vector<8x8xf32>
    %140 = arith.truncf %139 : vector<8x8xf32> to vector<8x8xbf16>
    %141 = arith.truncf %124 : vector<8x32xf32> to vector<8x32xbf16>
    %cst_65 = arith.constant dense<0.000000e+00> : vector<8x32xf32>
    %142 = tpu.matmul %140, %141, %cst_65 {dimension_numbers = #tpu.dot_dimension_numbers<[1], [0], [0], [1], [0, 0, 1, 1], [], []>} : vector<8x8xbf16>, vector<8x32xbf16>, vector<8x32xf32> -> vector<8x32xf32>
    %143 = arith.addf %17, %142 : vector<8x32xf32>
    %cst_66 = arith.constant dense<0.000000e+00> : vector<8xf32>
    %144 = vector.multi_reduction <add>, %143, %cst_66 [1] : vector<8x32xf32> to vector<8xf32>
    %145 = vector.shape_cast %144 : vector<8xf32> to vector<8x1xf32>
    %cst_67 = arith.constant 3.200000e+01 : f32
    %146 = vector.broadcast %cst_67 : f32 to vector<8x1xf32>
    %147 = arith.divf %145, %146 : vector<8x1xf32>
    %148 = vector.broadcast %147 : vector<8x1xf32> to vector<8x32xf32>
    %149 = arith.subf %143, %148 : vector<8x32xf32>
    %150 = arith.mulf %149, %149 : vector<8x32xf32>
    %cst_68 = arith.constant dense<0.000000e+00> : vector<8xf32>
    %151 = vector.multi_reduction <add>, %150, %cst_68 [1] : vector<8x32xf32> to vector<8xf32>
    %152 = vector.shape_cast %151 : vector<8xf32> to vector<8x1xf32>
    %cst_69 = arith.constant 3.200000e+01 : f32
    %153 = vector.broadcast %cst_69 : f32 to vector<8x1xf32>
    %154 = arith.divf %152, %153 : vector<8x1xf32>
    %155 = vector.broadcast %147 : vector<8x1xf32> to vector<8x32xf32>
    %156 = arith.subf %143, %155 : vector<8x32xf32>
    %cst_70 = arith.constant 9.99999974E-6 : f32
    %157 = vector.broadcast %cst_70 : f32 to vector<8x1xf32>
    %158 = arith.addf %154, %157 : vector<8x1xf32>
    %159 = math.rsqrt %158 : vector<8x1xf32>
    %160 = vector.broadcast %159 : vector<8x1xf32> to vector<8x32xf32>
    %161 = arith.mulf %156, %160 : vector<8x32xf32>
    %162 = vector.broadcast %8 : vector<1x32xf32> to vector<8x32xf32>
    %163 = arith.mulf %161, %162 : vector<8x32xf32>
    %164 = vector.broadcast %9 : vector<1x32xf32> to vector<8x32xf32>
    %165 = arith.addf %163, %164 : vector<8x32xf32>
    %166 = arith.truncf %165 : vector<8x32xf32> to vector<8x32xbf16>
    %cst_71 = arith.constant dense<0.000000e+00> : vector<8x32xf32>
    %167 = tpu.matmul %166, %10, %cst_71 {dimension_numbers = #tpu.dot_dimension_numbers<[1], [0], [0], [1], [0, 0, 1, 1], [], []>} : vector<8x32xbf16>, vector<32x32xbf16>, vector<8x32xf32> -> vector<8x32xf32>
    %168 = vector.broadcast %11 : vector<1x32xf32> to vector<8x32xf32>
    %169 = arith.addf %167, %168 : vector<8x32xf32>
    %cst_72 = arith.constant 5.000000e-01 : f32
    %170 = vector.broadcast %cst_72 : f32 to vector<8x32xf32>
    %171 = arith.mulf %170, %169 : vector<8x32xf32>
    %cst_73 = arith.constant 0.707106769 : f32
    %172 = vector.broadcast %cst_73 : f32 to vector<8x32xf32>
    %173 = arith.mulf %169, %172 : vector<8x32xf32>
    %174 = math.erf %173 : vector<8x32xf32>
    %cst_74 = arith.constant 1.000000e+00 : f32
    %175 = vector.broadcast %cst_74 : f32 to vector<8x32xf32>
    %176 = arith.addf %175, %174 : vector<8x32xf32>
    %177 = arith.mulf %171, %176 : vector<8x32xf32>
    %178 = arith.truncf %177 : vector<8x32xf32> to vector<8x32xbf16>
    %cst_75 = arith.constant dense<0.000000e+00> : vector<8x32xf32>
    %179 = tpu.matmul %178, %12, %cst_75 {dimension_numbers = #tpu.dot_dimension_numbers<[1], [0], [0], [1], [0, 0, 1, 1], [], []>} : vector<8x32xbf16>, vector<32x32xbf16>, vector<8x32xf32> -> vector<8x32xf32>
    %180 = vector.broadcast %13 : vector<1x32xf32> to vector<8x32xf32>
    %181 = arith.addf %179, %180 : vector<8x32xf32>
    %182 = arith.addf %165, %181 : vector<8x32xf32>
    %cst_76 = arith.constant dense<0.000000e+00> : vector<8xf32>
    %183 = vector.multi_reduction <add>, %182, %cst_76 [1] : vector<8x32xf32> to vector<8xf32>
    %184 = vector.shape_cast %183 : vector<8xf32> to vector<8x1xf32>
    %cst_77 = arith.constant 3.200000e+01 : f32
    %185 = vector.broadcast %cst_77 : f32 to vector<8x1xf32>
    %186 = arith.divf %184, %185 : vector<8x1xf32>
    %187 = vector.broadcast %186 : vector<8x1xf32> to vector<8x32xf32>
    %188 = arith.subf %182, %187 : vector<8x32xf32>
    %189 = arith.mulf %188, %188 : vector<8x32xf32>
    %cst_78 = arith.constant dense<0.000000e+00> : vector<8xf32>
    %190 = vector.multi_reduction <add>, %189, %cst_78 [1] : vector<8x32xf32> to vector<8xf32>
    %191 = vector.shape_cast %190 : vector<8xf32> to vector<8x1xf32>
    %cst_79 = arith.constant 3.200000e+01 : f32
    %192 = vector.broadcast %cst_79 : f32 to vector<8x1xf32>
    %193 = arith.divf %191, %192 : vector<8x1xf32>
    %194 = vector.broadcast %186 : vector<8x1xf32> to vector<8x32xf32>
    %195 = arith.subf %182, %194 : vector<8x32xf32>
    %cst_80 = arith.constant 9.99999974E-6 : f32
    %196 = vector.broadcast %cst_80 : f32 to vector<8x1xf32>
    %197 = arith.addf %193, %196 : vector<8x1xf32>
    %198 = math.rsqrt %197 : vector<8x1xf32>
    %199 = vector.broadcast %198 : vector<8x1xf32> to vector<8x32xf32>
    %200 = arith.mulf %195, %199 : vector<8x32xf32>
    %201 = vector.broadcast %14 : vector<1x32xf32> to vector<8x32xf32>
    %202 = arith.mulf %200, %201 : vector<8x32xf32>
    %203 = vector.broadcast %15 : vector<1x32xf32> to vector<8x32xf32>
    %204 = arith.addf %202, %203 : vector<8x32xf32>
    %205 = arith.negf %204 : vector<8x32xf32>
    %206 = math.exp %205 : vector<8x32xf32>
    %cst_81 = arith.constant 1.000000e+00 : f32
    %207 = vector.broadcast %cst_81 : f32 to vector<8x32xf32>
    %208 = arith.addf %207, %206 : vector<8x32xf32>
    %209 = arith.divf %207, %208 : vector<8x32xf32>
    %210 = arith.truncf %117 : vector<8x32xf32> to vector<8x32xbf16>
    %211 = arith.truncf %209 : vector<8x32xf32> to vector<8x32xbf16>
    %cst_82 = arith.constant dense<0.000000e+00> : vector<8x8xf32>
    %212 = tpu.matmul %210, %211, %cst_82 {dimension_numbers = #tpu.dot_dimension_numbers<[1], [1], [0], [0], [0, 0, 1, 0], [], []>} : vector<8x32xbf16>, vector<8x32xbf16>, vector<8x8xf32> -> vector<8x8xf32>
    %cst_83 = arith.constant 3.125000e-02 : f32
    %213 = vector.broadcast %cst_83 : f32 to vector<8x8xf32>
    %214 = arith.mulf %212, %213 : vector<8x8xf32>
    %c0_84 = arith.constant 0 : index
    %c0_85 = arith.constant 0 : index
    %c0_86 = arith.constant 0 : index
    %215 = vector.load %arg20[%c0_84, %c0_85, %c0_86] : memref<1x8x8xf32, #tpu.memory_space<vmem>>, vector<1x8x8xf32>
    %216 = vector.shape_cast %215 : vector<1x8x8xf32> to vector<8x8xf32>
    %217 = vector.shape_cast %214 : vector<8x8xf32> to vector<1x8x8xf32>
    tpu.vector_store %arg20[%c0_84, %c0_85, %c0_86], %217 {strides = array<i32>} : memref<1x8x8xf32, #tpu.memory_space<vmem>>, vector<1x8x8xf32>,
    return
  }
  func.func @transform_0(%arg0: i32) -> (i32, i32, i32) {
    %c0_i32 = arith.constant 0 : i32
    %c0_i32_0 = arith.constant 0 : i32
    %c0_i32_1 = arith.constant 0 : i32
    return %arg0, %c0_i32, %c0_i32_0 : i32, i32, i32
  }
  func.func @transform_1(%arg0: i32) -> (i32, i32) {
    %c0_i32 = arith.constant 0 : i32
    %c0_i32_0 = arith.constant 0 : i32
    %c0_i32_1 = arith.constant 0 : i32
    return %c0_i32, %c0_i32_0 : i32, i32
  }
  func.func @transform_2(%arg0: i32) -> (i32, i32) {
    %c0_i32 = arith.constant 0 : i32
    %c0_i32_0 = arith.constant 0 : i32
    %c0_i32_1 = arith.constant 0 : i32
    return %c0_i32, %c0_i32_0 : i32, i32
  }
  func.func @transform_3(%arg0: i32) -> (i32, i32) {
    %c0_i32 = arith.constant 0 : i32
    %c0_i32_0 = arith.constant 0 : i32
    %c0_i32_1 = arith.constant 0 : i32
    return %c0_i32, %c0_i32_0 : i32, i32
  }
  func.func @transform_4(%arg0: i32) -> (i32, i32) {
    %c0_i32 = arith.constant 0 : i32
    %c0_i32_0 = arith.constant 0 : i32
    %c0_i32_1 = arith.constant 0 : i32
    return %c0_i32, %c0_i32_0 : i32, i32
  }
  func.func @transform_5(%arg0: i32) -> (i32, i32) {
    %c0_i32 = arith.constant 0 : i32
    %c0_i32_0 = arith.constant 0 : i32
    %c0_i32_1 = arith.constant 0 : i32
    return %c0_i32, %c0_i32_0 : i32, i32
  }
  func.func @transform_6(%arg0: i32) -> (i32, i32) {
    %c0_i32 = arith.constant 0 : i32
    %c0_i32_0 = arith.constant 0 : i32
    %c0_i32_1 = arith.constant 0 : i32
    return %c0_i32, %c0_i32_0 : i32, i32
  }
  func.func @transform_7(%arg0: i32) -> (i32, i32) {
    %c0_i32 = arith.constant 0 : i32
    %c0_i32_0 = arith.constant 0 : i32
    %c0_i32_1 = arith.constant 0 : i32
    return %c0_i32, %c0_i32_0 : i32, i32
  }
  func.func @transform_8(%arg0: i32) -> (i32, i32) {
    %c0_i32 = arith.constant 0 : i32
    %c0_i32_0 = arith.constant 0 : i32
    %c0_i32_1 = arith.constant 0 : i32
    return %c0_i32, %c0_i32_0 : i32, i32
  }
  func.func @transform_9(%arg0: i32) -> (i32, i32) {
    %c0_i32 = arith.constant 0 : i32
    %c0_i32_0 = arith.constant 0 : i32
    %c0_i32_1 = arith.constant 0 : i32
    return %c0_i32, %c0_i32_0 : i32, i32
  }
  func.func @transform_10(%arg0: i32) -> (i32, i32) {
    %c0_i32 = arith.constant 0 : i32
    %c0_i32_0 = arith.constant 0 : i32
    %c0_i32_1 = arith.constant 0 : i32
    return %c0_i32, %c0_i32_0 : i32, i32
  }
  func.func @transform_11(%arg0: i32) -> (i32, i32) {
    %c0_i32 = arith.constant 0 : i32
    %c0_i32_0 = arith.constant 0 : i32
    %c0_i32_1 = arith.constant 0 : i32
    return %c0_i32, %c0_i32_0 : i32, i32
  }
  func.func @transform_12(%arg0: i32) -> (i32, i32) {
    %c0_i32 = arith.constant 0 : i32
    %c0_i32_0 = arith.constant 0 : i32
    %c0_i32_1 = arith.constant 0 : i32
    return %c0_i32, %c0_i32_0 : i32, i32
  }
  func.func @transform_13(%arg0: i32) -> (i32, i32) {
    %c0_i32 = arith.constant 0 : i32
    %c0_i32_0 = arith.constant 0 : i32
    %c0_i32_1 = arith.constant 0 : i32
    return %c0_i32, %c0_i32_0 : i32, i32
  }
  func.func @transform_14(%arg0: i32) -> (i32, i32) {
    %c0_i32 = arith.constant 0 : i32
    %c0_i32_0 = arith.constant 0 : i32
    %c0_i32_1 = arith.constant 0 : i32
    return %c0_i32, %c0_i32_0 : i32, i32
  }
  func.func @transform_15(%arg0: i32) -> (i32, i32) {
    %c0_i32 = arith.constant 0 : i32
    %c0_i32_0 = arith.constant 0 : i32
    %c0_i32_1 = arith.constant 0 : i32
    return %c0_i32, %c0_i32_0 : i32, i32
  }
  func.func @transform_16(%arg0: i32) -> (i32, i32) {
    %c0_i32 = arith.constant 0 : i32
    %c0_i32_0 = arith.constant 0 : i32
    %c0_i32_1 = arith.constant 0 : i32
    return %c0_i32, %c0_i32_0 : i32, i32
  }
  func.func @transform_17(%arg0: i32) -> (i32, i32) {
    %c0_i32 = arith.constant 0 : i32
    %c0_i32_0 = arith.constant 0 : i32
    %c0_i32_1 = arith.constant 0 : i32
    return %c0_i32, %c0_i32_0 : i32, i32
  }
  func.func @transform_18(%arg0: i32) -> (i32, i32) {
    %c0_i32 = arith.constant 0 : i32
    %c0_i32_0 = arith.constant 0 : i32
    %c0_i32_1 = arith.constant 0 : i32
    return %c0_i32, %c0_i32_0 : i32, i32
  }
  func.func @transform_19(%arg0: i32) -> (i32, i32, i32) {
    %c0_i32 = arith.constant 0 : i32
    %c0_i32_0 = arith.constant 0 : i32
    %c0_i32_1 = arith.constant 0 : i32
    return %arg0, %c0_i32, %c0_i32_0 : i32, i32, i32
  }
}

</mosaic_0001>

<llo_original>
// kernel: tpu_custom_call.1
$region0: #{tpu_custom_call.1}
  #allocation0 [shape = 'u32[]', space=smem, size = 0x4, offset = 0x4, fixed_abs, tag = 'smem constant byte address 0x4 - core index']
  #allocation1 [shape = 'u32[144,128]{1,0:T(1,128)}', space=vmem, size = 0x12000, scoped, tag = 'internal scratch']
  %s0 = inlined_call_operand.hbm [shape: f32[2,8,32], index: 0, kind: input, shape index: {}]
  %s1 = inlined_call_operand.hbm [shape: bf16[32,192], index: 1, kind: input, shape index: {}]
  %s2 = inlined_call_operand.hbm [shape: f32[1,192], index: 2, kind: input, shape index: {}]
  %s3 = inlined_call_operand.vmem [shape: f32[1,32], index: 3, kind: input, shape index: {}]
  %s4 = inlined_call_operand.hbm [shape: f32[1,32], index: 4, kind: input, shape index: {}]
  %s5 = inlined_call_operand.vmem [shape: bf16[32,32], index: 5, kind: input, shape index: {}]
  %s6 = inlined_call_operand.hbm [shape: f32[1,32], index: 6, kind: input, shape index: {}]
  %s7 = inlined_call_operand.hbm [shape: bf16[32,32], index: 7, kind: input, shape index: {}]
  %s8 = inlined_call_operand.hbm [shape: f32[1,32], index: 8, kind: input, shape index: {}]
  %s9 = inlined_call_operand.hbm [shape: f32[1,32], index: 9, kind: input, shape index: {}]
  %s10 = inlined_call_operand.hbm [shape: f32[1,32], index: 10, kind: input, shape index: {}]
  %s11 = inlined_call_operand.hbm [shape: f32[1,32], index: 11, kind: input, shape index: {}]
  %s12 = inlined_call_operand.hbm [shape: f32[1,32], index: 12, kind: input, shape index: {}]
  %s13 = inlined_call_operand.vmem [shape: bf16[32,32], index: 13, kind: input, shape index: {}]
  %s14 = inlined_call_operand.vmem [shape: f32[1,32], index: 14, kind: input, shape index: {}]
  %s15 = inlined_call_operand.vmem [shape: bf16[32,32], index: 15, kind: input, shape index: {}]
  %s16 = inlined_call_operand.vmem [shape: f32[1,32], index: 16, kind: input, shape index: {}]
  %s17 = inlined_call_operand.vmem [shape: f32[1,32], index: 17, kind: input, shape index: {}]
  %s18 = inlined_call_operand.vmem [shape: f32[1,32], index: 18, kind: input, shape index: {}]
  %s19 = inlined_call_operand.hbm [shape: f32[2,8,8], index: 19, kind: output, shape index: {}]
  %s20 = sld [smem:[#allocation0]]
  $region153: #{tpu_custom_call.1} parent=0
    _
  %s22 = ssub.s32 1, %s20
  %s23 = scalar_select 0, %s22, %s20
  $region1: #{tpu_custom_call.1} parent=0
    #allocation2 [shape = 'u8[8192]{0}', space=vmem, size = 0x2000, scoped, tag = 'input window, operand 0']
    #allocation3 [shape = 's32[2]{0}', space=sflag, size = 0x8, scoped, tag = 'scoped memory for tpu_custom_call.1']
    #allocation4 [shape = 's32[2]{0}', space=sflag, size = 0x8, scoped, tag = 'scoped memory for tpu_custom_call.1']
    #allocation5 [shape = 'u8[16384]{0}', space=vmem, size = 0x4000, scoped, tag = 'input window, operand 1, single buffered']
    #allocation6 [shape = 's32[1]{0}', space=sflag, size = 0x4, scoped, tag = 'scoped memory for tpu_custom_call.1']
    #allocation7 [shape = 'u8[1024]{0}', space=vmem, size = 0x400, scoped, tag = 'input window, operand 2, single buffered']
    #allocation8 [shape = 'u8[512]{0}', space=vmem, size = 0x400, scoped, tag = 'input window, operand 4, single buffered']
    #allocation9 [shape = 's32[1]{0}', space=sflag, size = 0x4, scoped, tag = 'scoped memory for tpu_custom_call.1']
    #allocation10 [shape = 'u8[512]{0}', space=vmem, size = 0x400, scoped, tag = 'input window, operand 6, single buffered']
    #allocation11 [shape = 'u8[8192]{0}', space=vmem, size = 0x2000, scoped, tag = 'input window, operand 7, single buffered']
    #allocation12 [shape = 's32[1]{0}', space=sflag, size = 0x4, scoped, tag = 'scoped memory for tpu_custom_call.1']
    #allocation13 [shape = 'u8[512]{0}', space=vmem, size = 0x400, scoped, tag = 'input window, operand 8, single buffered']
    #allocation14 [shape = 'u8[512]{0}', space=vmem, size = 0x400, scoped, tag = 'input window, operand 9, single buffered']
    #allocation15 [shape = 's32[1]{0}', space=sflag, size = 0x4, scoped, tag = 'scoped memory for tpu_custom_call.1']
    #allocation16 [shape = 'u8[512]{0}', space=vmem, size = 0x400, scoped, tag = 'input window, operand 10, single buffered']
    #allocation17 [shape = 'u8[512]{0}', space=vmem, size = 0x400, scoped, tag = 'input window, operand 11, single buffered']
    #allocation18 [shape = 's32[1]{0}', space=sflag, size = 0x4, scoped, tag = 'scoped memory for tpu_custom_call.1']
    #allocation19 [shape = 'u8[512]{0}', space=vmem, size = 0x400, scoped, tag = 'input window, operand 12, single buffered']
    #allocation20 [shape = 'u8[8192]{0}', space=vmem, size = 0x2000, scoped, tag = 'output window, operand 0']
    %24 = vsyncpa [#allocation3], 0
    %s25 = scalar_lea.sflag [#allocation3], 1
    %26 = vsyncpa %s25, 0
    %27 = vsyncpa [#allocation6], 0
    %28 = vsyncpa [#allocation9], 0
    %29 = vsyncpa [#allocation12], 0
    %30 = vsyncpa [#allocation15], 0
    %31 = vsyncpa [#allocation18], 0
    %32 = vsyncpa [#allocation4], 0
    %s33 = scalar_lea.sflag [#allocation4], 1
    %34 = vsyncpa %s33, 0
    loop: start=0, step=1, limit=4
    $region2: #{tpu_custom_call.1} parent=1 // loop_pre_header
      _
    $region3: #{tpu_custom_call.1} parent=1 // loop_header
      %s36 = sphi 0, %s40
      %p37 = scmp.ge.s32.totalorder %s36, 4
      %s46 = sphi 0, %s48
      %s49 = sphi 0, %s46
      %s50 = sphi 0, %s49
      %s66 = sphi 0, %s50
      %s70 = sphi 0, %s70
      %s72 = sphi 0, %s70
      %s73 = sphi 0, %s72
      %s87 = sphi 0, %s73
      %s91 = sphi 0, %s91
      %s93 = sphi 0, %s91
      %s94 = sphi 0, %s93
      %s108 = sphi 0, %s94
      %s112 = sphi 0, %s112
      %s114 = sphi 0, %s112
      %s115 = sphi 0, %s114
      %s129 = sphi 0, %s115
      %s133 = sphi 0, %s133
      %s135 = sphi 0, %s133
      %s136 = sphi 0, %s135
      %s150 = sphi 0, %s136
      %s154 = sphi 0, %s154
      %s156 = sphi 0, %s154
      %s157 = sphi 0, %s156
      %s171 = sphi 0, %s157
      %s175 = sphi 0, %s175
      %s177 = sphi 0, %s175
      %s178 = sphi 0, %s177
      %s192 = sphi 0, %s178
      %s196 = sphi 0, %s196
      %s198 = sphi 0, %s196
      %s199 = sphi 0, %s198
      %s213 = sphi 0, %s199
      %s217 = sphi 0, %s217
      %s219 = sphi 0, %s217
      %s220 = sphi 0, %s219
      %s234 = sphi 0, %s220
      %s238 = sphi 0, %s238
      %s240 = sphi 0, %s238
      %s241 = sphi 0, %s240
      %s255 = sphi 0, %s241
      %s259 = sphi 0, %s259
      %s261 = sphi 0, %s259
      %s262 = sphi 0, %s261
      %s276 = sphi 0, %s262
      %s280 = sphi 0, %s280
      %s282 = sphi 0, %s280
      %s283 = sphi 0, %s282
      %s297 = sphi 0, %s283
      %s301 = sphi 0, %s301
      %s303 = sphi 0, %s301
      %s304 = sphi 0, %s303
      %s318 = sphi 0, %s304
      %s322 = sphi 0, %s322
      %s324 = sphi 0, %s322
      %s325 = sphi 0, %s324
      %s339 = sphi 0, %s325
      %s343 = sphi 0, %s343
      %s345 = sphi 0, %s343
      %s346 = sphi 0, %s345
      %s360 = sphi 0, %s346
      %s364 = sphi 0, %s364
      %s366 = sphi 0, %s364
      %s367 = sphi 0, %s366
      %s381 = sphi 0, %s367
      %s385 = sphi 0, %s385
      %s387 = sphi 0, %s385
      %s388 = sphi 0, %s387
      %s402 = sphi 0, %s388
      %s406 = sphi 0, %s406
      %s408 = sphi 0, %s406
      %s409 = sphi 0, %s408
      %s423 = sphi 0, %s409
      %s427 = sphi 0, %s427
      %s429 = sphi 0, %s427
      %s430 = sphi 0, %s429
      %s444 = sphi 0, %s430
      %s450 = sphi 0, %s452
      %s453 = sphi 0, %s450
      %s454 = sphi 0, %s453
      %s470 = sphi 0, %s454
    $region4: #{tpu_custom_call.1} parent=1 // loop_header_branch
      %39 = sbr.rel (%p37) target = $region8
    $region5: #{tpu_custom_call.1} parent=1 // loop_body
      %s41 = ssub.s32 %s36, 1
      %s42 = ssub.s32 %s36, 2
      %s43 = sadd.s32 %s36, 1
      %s44 = ssub.s32 %s36, %s43
      %p45 = scmp.eq.s32.totalorder %s44, 0
      %s47 = sadd.s32 %s46, 1
      %s48 = scalar_select %p45, %s46, %s47
      %p51 = pneg %p45
      %p52 = scmp.eq.s32.totalorder %s36, 1
      %p53 = por %p51, %p52
      %p54 = scmp.ne.s32.totalorder %s46, %s49
      %p55 = scmp.eq.s32.totalorder %s36, 0
      %p56 = por %p54, %p55
      %p57 = scmp.ne.s32.totalorder %s46, %s49
      %p58 = scmp.eq.s32.totalorder %s41, 1
      %p59 = por %p57, %p58
      %p60 = scmp.ne.s32.totalorder %s49, %s50
      %p61 = scmp.eq.s32.totalorder %s41, 0
      %p62 = por %p60, %p61
      %p63 = scmp.ne.s32.totalorder %s49, %s50
      %p64 = scmp.eq.s32.totalorder %s42, 1
      %p65 = por %p63, %p64
      %p67 = scmp.ne.s32.totalorder %s50, %s66
      %p68 = scmp.eq.s32.totalorder %s42, 0
      %p69 = por %p67, %p68
      %s71 = sadd.s32 %s70, 1
      %p74 = scmp.eq.s32.totalorder %s36, 1
      %p75 = scmp.ne.s32.totalorder %s70, %s72
      %p76 = scmp.eq.s32.totalorder %s36, 0
      %p77 = por %p75, %p76
      %p78 = scmp.ne.s32.totalorder %s70, %s72
      %p79 = scmp.eq.s32.totalorder %s41, 1
      %p80 = por %p78, %p79
      %p81 = scmp.ne.s32.totalorder %s72, %s73
      %p82 = scmp.eq.s32.totalorder %s41, 0
      %p83 = por %p81, %p82
      %p84 = scmp.ne.s32.totalorder %s72, %s73
      %p85 = scmp.eq.s32.totalorder %s42, 1
      %p86 = por %p84, %p85
      %p88 = scmp.ne.s32.totalorder %s73, %s87
      %p89 = scmp.eq.s32.totalorder %s42, 0
      %p90 = por %p88, %p89
      %s92 = sadd.s32 %s91, 1
      %p95 = scmp.eq.s32.totalorder %s36, 1
      %p96 = scmp.ne.s32.totalorder %s91, %s93
      %p97 = scmp.eq.s32.totalorder %s36, 0
      %p98 = por %p96, %p97
      %p99 = scmp.ne.s32.totalorder %s91, %s93
      %p100 = scmp.eq.s32.totalorder %s41, 1
      %p101 = por %p99, %p100
      %p102 = scmp.ne.s32.totalorder %s93, %s94
      %p103 = scmp.eq.s32.totalorder %s41, 0
      %p104 = por %p102, %p103
      %p105 = scmp.ne.s32.totalorder %s93, %s94
      %p106 = scmp.eq.s32.totalorder %s42, 1
      %p107 = por %p105, %p106
      %p109 = scmp.ne.s32.totalorder %s94, %s108
      %p110 = scmp.eq.s32.totalorder %s42, 0
      %p111 = por %p109, %p110
      %s113 = sadd.s32 %s112, 1
      %p116 = scmp.eq.s32.totalorder %s36, 1
      %p117 = scmp.ne.s32.totalorder %s112, %s114
      %p118 = scmp.eq.s32.totalorder %s36, 0
      %p119 = por %p117, %p118
      %p120 = scmp.ne.s32.totalorder %s112, %s114
      %p121 = scmp.eq.s32.totalorder %s41, 1
      %p122 = por %p120, %p121
      %p123 = scmp.ne.s32.totalorder %s114, %s115
      %p124 = scmp.eq.s32.totalorder %s41, 0
      %p125 = por %p123, %p124
      %p126 = scmp.ne.s32.totalorder %s114, %s115
      %p127 = scmp.eq.s32.totalorder %s42, 1
      %p128 = por %p126, %p127
      %p130 = scmp.ne.s32.totalorder %s115, %s129
      %p131 = scmp.eq.s32.totalorder %s42, 0
      %p132 = por %p130, %p131
      %s134 = sadd.s32 %s133, 1
      %p137 = scmp.eq.s32.totalorder %s36, 1
      %p138 = scmp.ne.s32.totalorder %s133, %s135
      %p139 = scmp.eq.s32.totalorder %s36, 0
      %p140 = por %p138, %p139
      %p141 = scmp.ne.s32.totalorder %s133, %s135
      %p142 = scmp.eq.s32.totalorder %s41, 1
      %p143 = por %p141, %p142
      %p144 = scmp.ne.s32.totalorder %s135, %s136
      %p145 = scmp.eq.s32.totalorder %s41, 0
      %p146 = por %p144, %p145
      %p147 = scmp.ne.s32.totalorder %s135, %s136
      %p148 = scmp.eq.s32.totalorder %s42, 1
      %p149 = por %p147, %p148
      %p151 = scmp.ne.s32.totalorder %s136, %s150
      %p152 = scmp.eq.s32.totalorder %s42, 0
      %p153 = por %p151, %p152
      %s155 = sadd.s32 %s154, 1
      %p158 = scmp.eq.s32.totalorder %s36, 1
      %p159 = scmp.ne.s32.totalorder %s154, %s156
      %p160 = scmp.eq.s32.totalorder %s36, 0
      %p161 = por %p159, %p160
      %p162 = scmp.ne.s32.totalorder %s154, %s156
      %p163 = scmp.eq.s32.totalorder %s41, 1
      %p164 = por %p162, %p163
      %p165 = scmp.ne.s32.totalorder %s156, %s157
      %p166 = scmp.eq.s32.totalorder %s41, 0
      %p167 = por %p165, %p166
      %p168 = scmp.ne.s32.totalorder %s156, %s157
      %p169 = scmp.eq.s32.totalorder %s42, 1
      %p170 = por %p168, %p169
      %p172 = scmp.ne.s32.totalorder %s157, %s171
      %p173 = scmp.eq.s32.totalorder %s42, 0
      %p174 = por %p172, %p173
      %s176 = sadd.s32 %s175, 1
      %p179 = scmp.eq.s32.totalorder %s36, 1
      %p180 = scmp.ne.s32.totalorder %s175, %s177
      %p181 = scmp.eq.s32.totalorder %s36, 0
      %p182 = por %p180, %p181
      %p183 = scmp.ne.s32.totalorder %s175, %s177
      %p184 = scmp.eq.s32.totalorder %s41, 1
      %p185 = por %p183, %p184
      %p186 = scmp.ne.s32.totalorder %s177, %s178
      %p187 = scmp.eq.s32.totalorder %s41, 0
      %p188 = por %p186, %p187
      %p189 = scmp.ne.s32.totalorder %s177, %s178
      %p190 = scmp.eq.s32.totalorder %s42, 1
      %p191 = por %p189, %p190
      %p193 = scmp.ne.s32.totalorder %s178, %s192
      %p194 = scmp.eq.s32.totalorder %s42, 0
      %p195 = por %p193, %p194
      %s197 = sadd.s32 %s196, 1
      %p200 = scmp.eq.s32.totalorder %s36, 1
      %p201 = scmp.ne.s32.totalorder %s196, %s198
      %p202 = scmp.eq.s32.totalorder %s36, 0
      %p203 = por %p201, %p202
      %p204 = scmp.ne.s32.totalorder %s196, %s198
      %p205 = scmp.eq.s32.totalorder %s41, 1
      %p206 = por %p204, %p205
      %p207 = scmp.ne.s32.totalorder %s198, %s199
      %p208 = scmp.eq.s32.totalorder %s41, 0
      %p209 = por %p207, %p208
      %p210 = scmp.ne.s32.totalorder %s198, %s199
      %p211 = scmp.eq.s32.totalorder %s42, 1
      %p212 = por %p210, %p211
      %p214 = scmp.ne.s32.totalorder %s199, %s213
      %p215 = scmp.eq.s32.totalorder %s42, 0
      %p216 = por %p214, %p215
      %s218 = sadd.s32 %s217, 1
      %p221 = scmp.eq.s32.totalorder %s36, 1
      %p222 = scmp.ne.s32.totalorder %s217, %s219
      %p223 = scmp.eq.s32.totalorder %s36, 0
      %p224 = por %p222, %p223
      %p225 = scmp.ne.s32.totalorder %s217, %s219
      %p226 = scmp.eq.s32.totalorder %s41, 1
      %p227 = por %p225, %p226
      %p228 = scmp.ne.s32.totalorder %s219, %s220
      %p229 = scmp.eq.s32.totalorder %s41, 0
      %p230 = por %p228, %p229
      %p231 = scmp.ne.s32.totalorder %s219, %s220
      %p232 = scmp.eq.s32.totalorder %s42, 1
      %p233 = por %p231, %p232
      %p235 = scmp.ne.s32.totalorder %s220, %s234
      %p236 = scmp.eq.s32.totalorder %s42, 0
      %p237 = por %p235, %p236
      %s239 = sadd.s32 %s238, 1
      %p242 = scmp.eq.s32.totalorder %s36, 1
      %p243 = scmp.ne.s32.totalorder %s238, %s240
      %p244 = scmp.eq.s32.totalorder %s36, 0
      %p245 = por %p243, %p244
      %p246 = scmp.ne.s32.totalorder %s238, %s240
      %p247 = scmp.eq.s32.totalorder %s41, 1
      %p248 = por %p246, %p247
      %p249 = scmp.ne.s32.totalorder %s240, %s241
      %p250 = scmp.eq.s32.totalorder %s41, 0
      %p251 = por %p249, %p250
      %p252 = scmp.ne.s32.totalorder %s240, %s241
      %p253 = scmp.eq.s32.totalorder %s42, 1
      %p254 = por %p252, %p253
      %p256 = scmp.ne.s32.totalorder %s241, %s255
      %p257 = scmp.eq.s32.totalorder %s42, 0
      %p258 = por %p256, %p257
      %s260 = sadd.s32 %s259, 1
      %p263 = scmp.eq.s32.totalorder %s36, 1
      %p264 = scmp.ne.s32.totalorder %s259, %s261
      %p265 = scmp.eq.s32.totalorder %s36, 0
      %p266 = por %p264, %p265
      %p267 = scmp.ne.s32.totalorder %s259, %s261
      %p268 = scmp.eq.s32.totalorder %s41, 1
      %p269 = por %p267, %p268
      %p270 = scmp.ne.s32.totalorder %s261, %s262
      %p271 = scmp.eq.s32.totalorder %s41, 0
      %p272 = por %p270, %p271
      %p273 = scmp.ne.s32.totalorder %s261, %s262
      %p274 = scmp.eq.s32.totalorder %s42, 1
      %p275 = por %p273, %p274
      %p277 = scmp.ne.s32.totalorder %s262, %s276
      %p278 = scmp.eq.s32.totalorder %s42, 0
      %p279 = por %p277, %p278
      %s281 = sadd.s32 %s280, 1
      %p284 = scmp.eq.s32.totalorder %s36, 1
      %p285 = scmp.ne.s32.totalorder %s280, %s282
      %p286 = scmp.eq.s32.totalorder %s36, 0
      %p287 = por %p285, %p286
      %p288 = scmp.ne.s32.totalorder %s280, %s282
      %p289 = scmp.eq.s32.totalorder %s41, 1
      %p290 = por %p288, %p289
      %p291 = scmp.ne.s32.totalorder %s282, %s283
      %p292 = scmp.eq.s32.totalorder %s41, 0
      %p293 = por %p291, %p292
      %p294 = scmp.ne.s32.totalorder %s282, %s283
      %p295 = scmp.eq.s32.totalorder %s42, 1
      %p296 = por %p294, %p295
      %p298 = scmp.ne.s32.totalorder %s283, %s297
      %p299 = scmp.eq.s32.totalorder %s42, 0
      %p300 = por %p298, %p299
      %s302 = sadd.s32 %s301, 1
      %p305 = scmp.eq.s32.totalorder %s36, 1
      %p306 = scmp.ne.s32.totalorder %s301, %s303
      %p307 = scmp.eq.s32.totalorder %s36, 0
      %p308 = por %p306, %p307
      %p309 = scmp.ne.s32.totalorder %s301, %s303
      %p310 = scmp.eq.s32.totalorder %s41, 1
      %p311 = por %p309, %p310
      %p312 = scmp.ne.s32.totalorder %s303, %s304
      %p313 = scmp.eq.s32.totalorder %s41, 0
      %p314 = por %p312, %p313
      %p315 = scmp.ne.s32.totalorder %s303, %s304
      %p316 = scmp.eq.s32.totalorder %s42, 1
      %p317 = por %p315, %p316
      %p319 = scmp.ne.s32.totalorder %s304, %s318
      %p320 = scmp.eq.s32.totalorder %s42, 0
      %p321 = por %p319, %p320
      %s323 = sadd.s32 %s322, 1
      %p326 = scmp.eq.s32.totalorder %s36, 1
      %p327 = scmp.ne.s32.totalorder %s322, %s324
      %p328 = scmp.eq.s32.totalorder %s36, 0
      %p329 = por %p327, %p328
      %p330 = scmp.ne.s32.totalorder %s322, %s324
      %p331 = scmp.eq.s32.totalorder %s41, 1
      %p332 = por %p330, %p331
      %p333 = scmp.ne.s32.totalorder %s324, %s325
      %p334 = scmp.eq.s32.totalorder %s41, 0
      %p335 = por %p333, %p334
      %p336 = scmp.ne.s32.totalorder %s324, %s325
      %p337 = scmp.eq.s32.totalorder %s42, 1
      %p338 = por %p336, %p337
      %p340 = scmp.ne.s32.totalorder %s325, %s339
      %p341 = scmp.eq.s32.totalorder %s42, 0
      %p342 = por %p340, %p341
      %s344 = sadd.s32 %s343, 1
      %p347 = scmp.eq.s32.totalorder %s36, 1
      %p348 = scmp.ne.s32.totalorder %s343, %s345
      %p349 = scmp.eq.s32.totalorder %s36, 0
      %p350 = por %p348, %p349
      %p351 = scmp.ne.s32.totalorder %s343, %s345
      %p352 = scmp.eq.s32.totalorder %s41, 1
      %p353 = por %p351, %p352
      %p354 = scmp.ne.s32.totalorder %s345, %s346
      %p355 = scmp.eq.s32.totalorder %s41, 0
      %p356 = por %p354, %p355
      %p357 = scmp.ne.s32.totalorder %s345, %s346
      %p358 = scmp.eq.s32.totalorder %s42, 1
      %p359 = por %p357, %p358
      %p361 = scmp.ne.s32.totalorder %s346, %s360
      %p362 = scmp.eq.s32.totalorder %s42, 0
      %p363 = por %p361, %p362
      %s365 = sadd.s32 %s364, 1
      %p368 = scmp.eq.s32.totalorder %s36, 1
      %p369 = scmp.ne.s32.totalorder %s364, %s366
      %p370 = scmp.eq.s32.totalorder %s36, 0
      %p371 = por %p369, %p370
      %p372 = scmp.ne.s32.totalorder %s364, %s366
      %p373 = scmp.eq.s32.totalorder %s41, 1
      %p374 = por %p372, %p373
      %p375 = scmp.ne.s32.totalorder %s366, %s367
      %p376 = scmp.eq.s32.totalorder %s41, 0
      %p377 = por %p375, %p376
      %p378 = scmp.ne.s32.totalorder %s366, %s367
      %p379 = scmp.eq.s32.totalorder %s42, 1
      %p380 = por %p378, %p379
      %p382 = scmp.ne.s32.totalorder %s367, %s381
      %p383 = scmp.eq.s32.totalorder %s42, 0
      %p384 = por %p382, %p383
      %s386 = sadd.s32 %s385, 1
      %p389 = scmp.eq.s32.totalorder %s36, 1
      %p390 = scmp.ne.s32.totalorder %s385, %s387
      %p391 = scmp.eq.s32.totalorder %s36, 0
      %p392 = por %p390, %p391
      %p393 = scmp.ne.s32.totalorder %s385, %s387
      %p394 = scmp.eq.s32.totalorder %s41, 1
      %p395 = por %p393, %p394
      %p396 = scmp.ne.s32.totalorder %s387, %s388
      %p397 = scmp.eq.s32.totalorder %s41, 0
      %p398 = por %p396, %p397
      %p399 = scmp.ne.s32.totalorder %s387, %s388
      %p400 = scmp.eq.s32.totalorder %s42, 1
      %p401 = por %p399, %p400
      %p403 = scmp.ne.s32.totalorder %s388, %s402
      %p404 = scmp.eq.s32.totalorder %s42, 0
      %p405 = por %p403, %p404
      %s407 = sadd.s32 %s406, 1
      %p410 = scmp.eq.s32.totalorder %s36, 1
      %p411 = scmp.ne.s32.totalorder %s406, %s408
      %p412 = scmp.eq.s32.totalorder %s36, 0
      %p413 = por %p411, %p412
      %p414 = scmp.ne.s32.totalorder %s406, %s408
      %p415 = scmp.eq.s32.totalorder %s41, 1
      %p416 = por %p414, %p415
      %p417 = scmp.ne.s32.totalorder %s408, %s409
      %p418 = scmp.eq.s32.totalorder %s41, 0
      %p419 = por %p417, %p418
      %p420 = scmp.ne.s32.totalorder %s408, %s409
      %p421 = scmp.eq.s32.totalorder %s42, 1
      %p422 = por %p420, %p421
      %p424 = scmp.ne.s32.totalorder %s409, %s423
      %p425 = scmp.eq.s32.totalorder %s42, 0
      %p426 = por %p424, %p425
      %s428 = sadd.s32 %s427, 1
      %p431 = scmp.eq.s32.totalorder %s36, 1
      %p432 = scmp.ne.s32.totalorder %s427, %s429
      %p433 = scmp.eq.s32.totalorder %s36, 0
      %p434 = por %p432, %p433
      %p435 = scmp.ne.s32.totalorder %s427, %s429
      %p436 = scmp.eq.s32.totalorder %s41, 1
      %p437 = por %p435, %p436
      %p438 = scmp.ne.s32.totalorder %s429, %s430
      %p439 = scmp.eq.s32.totalorder %s41, 0
      %p440 = por %p438, %p439
      %p441 = scmp.ne.s32.totalorder %s429, %s430
      %p442 = scmp.eq.s32.totalorder %s42, 1
      %p443 = por %p441, %p442
      %p445 = scmp.ne.s32.totalorder %s430, %s444
      %p446 = scmp.eq.s32.totalorder %s42, 0
      %p447 = por %p445, %p446
      %s448 = ssub.s32 %s36, %s43
      %p449 = scmp.eq.s32.totalorder %s448, 0
      %s451 = sadd.s32 %s450, 1
      %s452 = scalar_select %p449, %s450, %s451
      %p455 = pneg %p449
      %p456 = scmp.eq.s32.totalorder %s36, 1
      %p457 = por %p455, %p456
      %p458 = scmp.ne.s32.totalorder %s450, %s453
      %p459 = scmp.eq.s32.totalorder %s36, 0
      %p460 = por %p458, %p459
      %p461 = scmp.ne.s32.totalorder %s450, %s453
      %p462 = scmp.eq.s32.totalorder %s41, 1
      %p463 = por %p461, %p462
      %p464 = scmp.ne.s32.totalorder %s453, %s454
      %p465 = scmp.eq.s32.totalorder %s41, 0
      %p466 = por %p464, %p465
      %p467 = scmp.ne.s32.totalorder %s453, %s454
      %p468 = scmp.eq.s32.totalorder %s42, 1
      %p469 = por %p467, %p468
      %p471 = scmp.ne.s32.totalorder %s454, %s470
      %p472 = scmp.eq.s32.totalorder %s42, 0
      %p473 = por %p471, %p472
      %p474 = scmp.le.s32.totalorder 1, %s36
      %p475 = scmp.lt.s32.totalorder %s36, 3
      %p476 = pnand %p474, %p475
      %p477 = pneg %p476
      // Predicated region
      $region9: #{tpu_custom_call.1} parent=5 // pred_check
        _
      $region10: #{tpu_custom_call.1} parent=5 // pred_check_branch
        %479 = sbr.rel (%p476) target = $region12
      $region11: #{tpu_custom_call.1} parent=5 // pred_region
        %s480 = ssub.s32 %s36, 1
        // Predicated region
        $region13: #{tpu_custom_call.1} parent=11 // pred_check
          %p481 = pneg %p83
        $region14: #{tpu_custom_call.1} parent=11 // pred_check_branch
          %483 = sbr.rel (%p481) target = $region16
        $region15: #{tpu_custom_call.1} parent=11 // pred_region
          %s485 = ssub.s32 512, 512
          %486 = vsyncadd [#allocation6], %s485
          %s487 = sshll.u32 [#allocation5], 4
          %s488 = int_to_ptr.vmem [resolvable:$true] %s487
          %493 = dma.hbm_to_vmem [thread:$0]  %s1, 512, %s488, [#allocation6], 128, 128, 8
        $region16: #{tpu_custom_call.1} parent=11 // pred_fallthru
          _
        // Predicated region
        $region17: #{tpu_custom_call.1} parent=11 // pred_check
          %p494 = pneg %p104
        $region18: #{tpu_custom_call.1} parent=11 // pred_check_branch
          %496 = sbr.rel (%p494) target = $region20
        $region19: #{tpu_custom_call.1} parent=11 // pred_region
          %s498 = ssub.s32 32, 32
          %499 = vsyncadd [#allocation6], %s498
          %s501 = sshll.u32 [#allocation7], 4
          %s502 = int_to_ptr.vmem [resolvable:$true] %s501
          %504 = dma.hbm_to_vmem [thread:$0]  %s2, 32, %s502, [#allocation6]
        $region20: #{tpu_custom_call.1} parent=11 // pred_fallthru
          _
        // Predicated region
        $region21: #{tpu_custom_call.1} parent=11 // pred_check
          %p505 = pneg %p125
        $region22: #{tpu_custom_call.1} parent=11 // pred_check_branch
          %507 = sbr.rel (%p505) target = $region24
        $region23: #{tpu_custom_call.1} parent=11 // pred_region
          _
        $region24: #{tpu_custom_call.1} parent=11 // pred_fallthru
          _
        // Predicated region
        $region25: #{tpu_custom_call.1} parent=11 // pred_check
          %p508 = pneg %p146
        $region26: #{tpu_custom_call.1} parent=11 // pred_check_branch
          %510 = sbr.rel (%p508) target = $region28
        $region27: #{tpu_custom_call.1} parent=11 // pred_region
          %s512 = ssub.s32 16, 16
          %513 = vsyncadd [#allocation9], %s512
          %s515 = sshll.u32 [#allocation8], 4
          %s516 = int_to_ptr.vmem [resolvable:$true] %s515
          %518 = dma.hbm_to_vmem [thread:$0]  %s4, 16, %s516, [#allocation9]
        $region28: #{tpu_custom_call.1} parent=11 // pred_fallthru
          _
        // Predicated region
        $region29: #{tpu_custom_call.1} parent=11 // pred_check
          %p519 = pneg %p167
        $region30: #{tpu_custom_call.1} parent=11 // pred_check_branch
          %521 = sbr.rel (%p519) target = $region32
        $region31: #{tpu_custom_call.1} parent=11 // pred_region
          _
        $region32: #{tpu_custom_call.1} parent=11 // pred_fallthru
          _
        // Predicated region
        $region33: #{tpu_custom_call.1} parent=11 // pred_check
          %p522 = pneg %p188
        $region34: #{tpu_custom_call.1} parent=11 // pred_check_branch
          %524 = sbr.rel (%p522) target = $region36
        $region35: #{tpu_custom_call.1} parent=11 // pred_region
          %s526 = ssub.s32 16, 16
          %527 = vsyncadd [#allocation9], %s526
          %s529 = sshll.u32 [#allocation10], 4
          %s530 = int_to_ptr.vmem [resolvable:$true] %s529
          %532 = dma.hbm_to_vmem [thread:$0]  %s6, 16, %s530, [#allocation9]
        $region36: #{tpu_custom_call.1} parent=11 // pred_fallthru
          _
        // Predicated region
        $region37: #{tpu_custom_call.1} parent=11 // pred_check
          %p533 = pneg %p209
        $region38: #{tpu_custom_call.1} parent=11 // pred_check_branch
          %535 = sbr.rel (%p533) target = $region40
        $region39: #{tpu_custom_call.1} parent=11 // pred_region
          %s537 = ssub.s32 256, 256
          %538 = vsyncadd [#allocation12], %s537
          %s539 = sshll.u32 [#allocation11], 4
          %s540 = int_to_ptr.vmem [resolvable:$true] %s539
          %545 = dma.hbm_to_vmem [thread:$0]  %s7, 256, %s540, [#allocation12], 64, 64, 4
        $region40: #{tpu_custom_call.1} parent=11 // pred_fallthru
          _
        // Predicated region
        $region41: #{tpu_custom_call.1} parent=11 // pred_check
          %p546 = pneg %p230
        $region42: #{tpu_custom_call.1} parent=11 // pred_check_branch
          %548 = sbr.rel (%p546) target = $region44
        $region43: #{tpu_custom_call.1} parent=11 // pred_region
          %s550 = ssub.s32 16, 16
          %551 = vsyncadd [#allocation12], %s550
          %s553 = sshll.u32 [#allocation13], 4
          %s554 = int_to_ptr.vmem [resolvable:$true] %s553
          %556 = dma.hbm_to_vmem [thread:$0]  %s8, 16, %s554, [#allocation12]
        $region44: #{tpu_custom_call.1} parent=11 // pred_fallthru
          _
        // Predicated region
        $region45: #{tpu_custom_call.1} parent=11 // pred_check
          %p557 = pneg %p251
        $region46: #{tpu_custom_call.1} parent=11 // pred_check_branch
          %559 = sbr.rel (%p557) target = $region48
        $region47: #{tpu_custom_call.1} parent=11 // pred_region
          %s561 = ssub.s32 16, 16
          %562 = vsyncadd [#allocation15], %s561
          %s564 = sshll.u32 [#allocation14], 4
          %s565 = int_to_ptr.vmem [resolvable:$true] %s564
          %567 = dma.hbm_to_vmem [thread:$0]  %s9, 16, %s565, [#allocation15]
        $region48: #{tpu_custom_call.1} parent=11 // pred_fallthru
          _
        // Predicated region
        $region49: #{tpu_custom_call.1} parent=11 // pred_check
          %p568 = pneg %p272
        $region50: #{tpu_custom_call.1} parent=11 // pred_check_branch
          %570 = sbr.rel (%p568) target = $region52
        $region51: #{tpu_custom_call.1} parent=11 // pred_region
          %s572 = ssub.s32 16, 16
          %573 = vsyncadd [#allocation15], %s572
          %s575 = sshll.u32 [#allocation16], 4
          %s576 = int_to_ptr.vmem [resolvable:$true] %s575
          %578 = dma.hbm_to_vmem [thread:$0]  %s10, 16, %s576, [#allocation15]
        $region52: #{tpu_custom_call.1} parent=11 // pred_fallthru
          _
        // Predicated region
        $region53: #{tpu_custom_call.1} parent=11 // pred_check
          %p579 = pneg %p293
        $region54: #{tpu_custom_call.1} parent=11 // pred_check_branch
          %581 = sbr.rel (%p579) target = $region56
        $region55: #{tpu_custom_call.1} parent=11 // pred_region
          %s583 = ssub.s32 16, 16
          %584 = vsyncadd [#allocation18], %s583
          %s586 = sshll.u32 [#allocation17], 4
          %s587 = int_to_ptr.vmem [resolvable:$true] %s586
          %589 = dma.hbm_to_vmem [thread:$0]  %s11, 16, %s587, [#allocation18]
        $region56: #{tpu_custom_call.1} parent=11 // pred_fallthru
          _
        // Predicated region
        $region57: #{tpu_custom_call.1} parent=11 // pred_check
          %p590 = pneg %p314
        $region58: #{tpu_custom_call.1} parent=11 // pred_check_branch
          %592 = sbr.rel (%p590) target = $region60
        $region59: #{tpu_custom_call.1} parent=11 // pred_region
          %s594 = ssub.s32 16, 16
          %595 = vsyncadd [#allocation18], %s594
          %s597 = sshll.u32 [#allocation19], 4
          %s598 = int_to_ptr.vmem [resolvable:$true] %s597
          %600 = dma.hbm_to_vmem [thread:$0]  %s12, 16, %s598, [#allocation18]
        $region60: #{tpu_custom_call.1} parent=11 // pred_fallthru
          _
        // Predicated region
        $region61: #{tpu_custom_call.1} parent=11 // pred_check
          %p601 = pneg %p335
        $region62: #{tpu_custom_call.1} parent=11 // pred_check_branch
          %603 = sbr.rel (%p601) target = $region64
        $region63: #{tpu_custom_call.1} parent=11 // pred_region
          _
        $region64: #{tpu_custom_call.1} parent=11 // pred_fallthru
          _
        // Predicated region
        $region65: #{tpu_custom_call.1} parent=11 // pred_check
          %p604 = pneg %p356
        $region66: #{tpu_custom_call.1} parent=11 // pred_check_branch
          %606 = sbr.rel (%p604) target = $region68
        $region67: #{tpu_custom_call.1} parent=11 // pred_region
          _
        $region68: #{tpu_custom_call.1} parent=11 // pred_fallthru
          _
        // Predicated region
        $region69: #{tpu_custom_call.1} parent=11 // pred_check
          %p607 = pneg %p377
        $region70: #{tpu_custom_call.1} parent=11 // pred_check_branch
          %609 = sbr.rel (%p607) target = $region72
        $region71: #{tpu_custom_call.1} parent=11 // pred_region
          _
        $region72: #{tpu_custom_call.1} parent=11 // pred_fallthru
          _
        // Predicated region
        $region73: #{tpu_custom_call.1} parent=11 // pred_check
          %p610 = pneg %p398
        $region74: #{tpu_custom_call.1} parent=11 // pred_check_branch
          %612 = sbr.rel (%p610) target = $region76
        $region75: #{tpu_custom_call.1} parent=11 // pred_region
          _
        $region76: #{tpu_custom_call.1} parent=11 // pred_fallthru
          _
        // Predicated region
        $region77: #{tpu_custom_call.1} parent=11 // pred_check
          %p613 = pneg %p419
        $region78: #{tpu_custom_call.1} parent=11 // pred_check_branch
          %615 = sbr.rel (%p613) target = $region80
        $region79: #{tpu_custom_call.1} parent=11 // pred_region
          _
        $region80: #{tpu_custom_call.1} parent=11 // pred_fallthru
          _
        // Predicated region
        $region81: #{tpu_custom_call.1} parent=11 // pred_check
          %p616 = pneg %p440
        $region82: #{tpu_custom_call.1} parent=11 // pred_check_branch
          %618 = sbr.rel (%p616) target = $region84
        $region83: #{tpu_custom_call.1} parent=11 // pred_region
          _
        $region84: #{tpu_custom_call.1} parent=11 // pred_fallthru
          _
      $region12: #{tpu_custom_call.1} parent=5 // pred_fallthru
        _
      %p619 = scmp.lt.s32.totalorder %s36, 2
      // Predicated region
      $region85: #{tpu_custom_call.1} parent=5 // pred_check
        %p620 = pneg %p619
      $region86: #{tpu_custom_call.1} parent=5 // pred_check_branch
        %622 = sbr.rel (%p620) target = $region88
      $region87: #{tpu_custom_call.1} parent=5 // pred_region
        // Predicated region
        $region89: #{tpu_custom_call.1} parent=87 // pred_check
          %p623 = pneg %p56
        $region90: #{tpu_custom_call.1} parent=87 // pred_check_branch
          %625 = sbr.rel (%p623) target = $region92
        $region91: #{tpu_custom_call.1} parent=87 // pred_region
          %s626 = sand.u32 %s46, 1
          %s627 = scalar_lea.sflag [#allocation3], %s626
          %s628 = sand.u32 %s46, 1
          %s629 = smul.addr %s628, 8
          %s630 = scalar_lea.vmem [#allocation2], %s629
          %s632 = ssub.s32 128, 128
          %633 = vsyncadd %s627, %s632
          %s634 = smul.addr %s36, 128
          %s635 = scalar_lea.hbm %s0, %s634
          %s637 = sshll.u32 %s630, 4
          %s638 = int_to_ptr.vmem [resolvable:$true] %s637
          %640 = dma.hbm_to_vmem [thread:$0]  %s635, 128, %s638, %s627
        $region92: #{tpu_custom_call.1} parent=87 // pred_fallthru
          _
      $region88: #{tpu_custom_call.1} parent=5 // pred_fallthru
        _
      %p641 = scmp.le.s32.totalorder 1, %s36
      %p642 = scmp.lt.s32.totalorder %s36, 3
      %p643 = pnand %p641, %p642
      %p644 = pneg %p643
      // Predicated region
      $region93: #{tpu_custom_call.1} parent=5 // pred_check
        _
      $region94: #{tpu_custom_call.1} parent=5 // pred_check_branch
        %646 = sbr.rel (%p643) target = $region96
      $region95: #{tpu_custom_call.1} parent=5 // pred_region
        %s647 = ssub.s32 %s36, 1
        %s648 = sand.u32 %s49, 1
        %s649 = scalar_lea.sflag [#allocation3], %s648
        %s650 = sand.u32 %s49, 1
        %s651 = smul.addr %s650, 8
        %s652 = scalar_lea.vmem [#allocation2], %s651
        // Predicated region
        $region97: #{tpu_custom_call.1} parent=95 // pred_check
          %p653 = pneg %p62
        $region98: #{tpu_custom_call.1} parent=95 // pred_check_branch
          %655 = sbr.rel (%p653) target = $region100
        $region99: #{tpu_custom_call.1} parent=95 // pred_region
          %656 = dma.done %s649, 128
        $region100: #{tpu_custom_call.1} parent=95 // pred_fallthru
          _
        // Predicated region
        $region101: #{tpu_custom_call.1} parent=95 // pred_check
          %p657 = pneg %p83
        $region102: #{tpu_custom_call.1} parent=95 // pred_check_branch
          %659 = sbr.rel (%p657) target = $region104
        $region103: #{tpu_custom_call.1} parent=95 // pred_region
          %660 = dma.done [#allocation6], 512
        $region104: #{tpu_custom_call.1} parent=95 // pred_fallthru
          _
        // Predicated region
        $region105: #{tpu_custom_call.1} parent=95 // pred_check
          %p661 = pneg %p104
        $region106: #{tpu_custom_call.1} parent=95 // pred_check_branch
          %663 = sbr.rel (%p661) target = $region108
        $region107: #{tpu_custom_call.1} parent=95 // pred_region
          %664 = dma.done [#allocation6], 32
        $region108: #{tpu_custom_call.1} parent=95 // pred_fallthru
          _
        // Predicated region
        $region109: #{tpu_custom_call.1} parent=95 // pred_check
          %p665 = pneg %p146
        $region110: #{tpu_custom_call.1} parent=95 // pred_check_branch
          %667 = sbr.rel (%p665) target = $region112
        $region111: #{tpu_custom_call.1} parent=95 // pred_region
          %668 = dma.done [#allocation9], 16
        $region112: #{tpu_custom_call.1} parent=95 // pred_fallthru
          _
        // Predicated region
        $region113: #{tpu_custom_call.1} parent=95 // pred_check
          %p669 = pneg %p188
        $region114: #{tpu_custom_call.1} parent=95 // pred_check_branch
          %671 = sbr.rel (%p669) target = $region116
        $region115: #{tpu_custom_call.1} parent=95 // pred_region
          %672 = dma.done [#allocation9], 16
        $region116: #{tpu_custom_call.1} parent=95 // pred_fallthru
          _
        // Predicated region
        $region117: #{tpu_custom_call.1} parent=95 // pred_check
          %p673 = pneg %p209
        $region118: #{tpu_custom_call.1} parent=95 // pred_check_branch
          %675 = sbr.rel (%p673) target = $region120
        $region119: #{tpu_custom_call.1} parent=95 // pred_region
          %676 = dma.done [#allocation12], 256
        $region120: #{tpu_custom_call.1} parent=95 // pred_fallthru
          _
        // Predicated region
        $region121: #{tpu_custom_call.1} parent=95 // pred_check
          %p677 = pneg %p230
        $region122: #{tpu_custom_call.1} parent=95 // pred_check_branch
          %679 = sbr.rel (%p677) target = $region124
        $region123: #{tpu_custom_call.1} parent=95 // pred_region
          %680 = dma.done [#allocation12], 16
        $region124: #{tpu_custom_call.1} parent=95 // pred_fallthru
          _
        // Predicated region
        $region125: #{tpu_custom_call.1} parent=95 // pred_check
          %p681 = pneg %p251
        $region126: #{tpu_custom_call.1} parent=95 // pred_check_branch
          %683 = sbr.rel (%p681) target = $region128
        $region127: #{tpu_custom_call.1} parent=95 // pred_region
          %684 = dma.done [#allocation15], 16
        $region128: #{tpu_custom_call.1} parent=95 // pred_fallthru
          _
        // Predicated region
        $region129: #{tpu_custom_call.1} parent=95 // pred_check
          %p685 = pneg %p272
        $region130: #{tpu_custom_call.1} parent=95 // pred_check_branch
          %687 = sbr.rel (%p685) target = $region132
        $region131: #{tpu_custom_call.1} parent=95 // pred_region
          %688 = dma.done [#allocation15], 16
        $region132: #{tpu_custom_call.1} parent=95 // pred_fallthru
          _
        // Predicated region
        $region133: #{tpu_custom_call.1} parent=95 // pred_check
          %p689 = pneg %p293
        $region134: #{tpu_custom_call.1} parent=95 // pred_check_branch
          %691 = sbr.rel (%p689) target = $region136
        $region135: #{tpu_custom_call.1} parent=95 // pred_region
          %692 = dma.done [#allocation18], 16
        $region136: #{tpu_custom_call.1} parent=95 // pred_fallthru
          _
        // Predicated region
        $region137: #{tpu_custom_call.1} parent=95 // pred_check
          %p693 = pneg %p314
        $region138: #{tpu_custom_call.1} parent=95 // pred_check_branch
          %695 = sbr.rel (%p693) target = $region140
        $region139: #{tpu_custom_call.1} parent=95 // pred_region
          %696 = dma.done [#allocation18], 16
        $region140: #{tpu_custom_call.1} parent=95 // pred_fallthru
          _
        %s697 = sand.u32 %s49, 1
        %s698 = scalar_lea.sflag [#allocation3], %s697
        %s699 = sand.u32 %s49, 1
        %s700 = smul.addr %s699, 8
        %s701 = scalar_lea.vmem [#allocation2], %s700
        %p702 = pneg %p62
        %p703 = pneg %p59
        %p704 = pneg %p83
        %p705 = pneg %p80
        %p706 = pneg %p104
        %p707 = pneg %p101
        %p708 = pneg %p125
        %p709 = pneg %p122
        %p710 = pneg %p146
        %p711 = pneg %p143
        %p712 = pneg %p167
        %p713 = pneg %p164
        %p714 = pneg %p188
        %p715 = pneg %p185
        %p716 = pneg %p209
        %p717 = pneg %p206
        %p718 = pneg %p230
        %p719 = pneg %p227
        %p720 = pneg %p251
        %p721 = pneg %p248
        %p722 = pneg %p272
        %p723 = pneg %p269
        %p724 = pneg %p293
        %p725 = pneg %p290
        %p726 = pneg %p314
        %p727 = pneg %p311
        %p728 = pneg %p335
        %p729 = pneg %p332
        %p730 = pneg %p356
        %p731 = pneg %p353
        %p732 = pneg %p377
        %p733 = pneg %p374
        %p734 = pneg %p398
        %p735 = pneg %p395
        %p736 = pneg %p419
        %p737 = pneg %p416
        %p738 = pneg %p440
        %p739 = pneg %p437
        %p740 = pneg %p466
        %p741 = pneg %p463
        %s742 = sand.u32 %s453, 1
        %s743 = scalar_lea.sflag [#allocation4], %s742
        %s744 = sand.u32 %s453, 1
        %s745 = smul.addr %s744, 8
        %s746 = scalar_lea.vmem [#allocation20], %s745
        %v748 = vld [vmem:[%s3] sm:$0x1]
        %v749 = vld [vmem:[#allocation8] sm:$0x1]
        %v750 = vld [vmem:[%s5] sm:$0xf]
        %v751 = vld [vmem:[%s5 + $0x4] sm:$0xf]
        %v752 = vld [vmem:[%s5 + $0x8] sm:$0xf]
        %v753 = vld [vmem:[%s5 + $0xc] sm:$0xf]
        %v754 = vld [vmem:[#allocation10] sm:$0x1]
        %v755 = vld [vmem:[#allocation11] sm:$0xf]
        %v756 = vld [vmem:[#allocation11 + $0x4] sm:$0xf]
        %v757 = vld [vmem:[#allocation11 + $0x8] sm:$0xf]
        %v758 = vld [vmem:[#allocation11 + $0xc] sm:$0xf]
        %v759 = vld [vmem:[#allocation13] sm:$0x1]
        %v760 = vld [vmem:[#allocation14] sm:$0x1]
        %v761 = vld [vmem:[#allocation16] sm:$0x1]
        %v762 = vld [vmem:[#allocation17] sm:$0x1]
        %v763 = vld [vmem:[#allocation19] sm:$0x1]
        %v764 = vld [vmem:[%s13] sm:$0xf]
        %v765 = vld [vmem:[%s13 + $0x4] sm:$0xf]
        %v766 = vld [vmem:[%s13 + $0x8] sm:$0xf]
        %v767 = vld [vmem:[%s13 + $0xc] sm:$0xf]
        %v768 = vld [vmem:[%s14] sm:$0x1]
        %v769 = vld [vmem:[%s15] sm:$0xf]
        %v770 = vld [vmem:[%s15 + $0x4] sm:$0xf]
        %v771 = vld [vmem:[%s15 + $0x8] sm:$0xf]
        %v772 = vld [vmem:[%s15 + $0xc] sm:$0xf]
        %v773 = vld [vmem:[%s16] sm:$0x1]
        %v774 = vld [vmem:[%s17] sm:$0x1]
        %v775 = vld [vmem:[%s18] sm:$0x1]
        %v776 = vld [vmem:[%s652] sm:$0xff]
        %v777 = vpack.c.bf16 %v776, %v776
        %v778 = vld [vmem:[#allocation5] sm:$0xff]
        %v779 = vld [vmem:[#allocation5 + $0x8] sm:$0xff]
        %v780 = vld [vmem:[#allocation5 + $0x10] sm:$0xff]
        %v781 = vld [vmem:[#allocation5 + $0x18] sm:$0xff]
        %v782 = vld [vmem:[#allocation7] sm:$0x3]
        %v784 = vlaneseq
        %v785 = vshrl.u32 %v784, 7
        %v786 = vsub.s32 0, %v785
        %v787 = vrot.slane %v782, %v786
        %v788 = vlaneseq
        %v789 = vshrl.u32 %v788, 7
        %v790 = vsub.s32 1, %v789
        %v791 = vrot.slane %v782, %v790
        %v798 = vunpack.c.l.b16 %v778
        %v799 = vunpack.c.h.b16 %v778
        %v800 = vunpack.c.l.b16 %v779
        %v801 = vunpack.c.h.b16 %v779
        %v802 = vunpack.c.l.b16 %v780
        %v803 = vunpack.c.h.b16 %v780
        %v804 = vunpack.c.l.b16 %v781
        %v805 = vunpack.c.h.b16 %v781
        %v806 = vpack.c.b16 %v800, %v798
        %v807 = vpack.c.b16 %v801, %v799
        %v808 = vpack.c.b16 %v804, %v802
        %v809 = vpack.c.b16 %v805, %v803
        %vm814 = vcmask 261120
        %v816 = vsel %vm814, %v777, 0
        %818 = vmatprep.subr.bf16.mxu0 %v807
        %819 = vmatpush1.bf16.msra.mxu0 %v806
        %820 = vmatprep.subr.bf16.mxu0 %v809
        %821 = vmatpush1.bf16.msra.mxu0 %v808
        %822 = vmatprep.subr.bf16.mxu0 0
        %823 = vmatpush1.bf16.msra.mxu0 0
        %824 = vmatprep.subr.bf16.mxu0 0
        %825 = vmatpush1.bf16.msra.mxu0 0
        %826 = vmatprep.subr.bf16.mxu0 0
        %827 = vmatpush1.bf16.msra.mxu0 0
        %828 = vmatprep.subr.bf16.mxu0 0
        %829 = vmatpush1.bf16.msra.mxu0 0
        %830 = vmatprep.subr.bf16.mxu0 0
        %831 = vmatpush1.bf16.msra.mxu0 0
        %832 = vmatprep.subr.bf16.mxu0 0
        %833 = vmatpush1.bf16.msra.mxu0 0
        %834 = vmatprep.subr.bf16.mxu0 0
        %835 = vmatpush1.bf16.msra.mxu0 0
        %836 = vmatprep.subr.bf16.mxu0 0
        %837 = vmatpush1.bf16.msra.mxu0 0
        %838 = vmatprep.subr.bf16.mxu0 0
        %839 = vmatpush1.bf16.msra.mxu0 0
        %840 = vmatprep.subr.bf16.mxu0 0
        %841 = vmatpush1.bf16.msra.mxu0 0
        %842 = vmatprep.subr.bf16.mxu0 0
        %843 = vmatpush1.bf16.msra.mxu0 0
        %844 = vmatprep.subr.bf16.mxu0 0
        %845 = vmatpush1.bf16.msra.mxu0 0
        %846 = vmatprep.subr.bf16.mxu0 0
        %847 = vmatpush1.bf16.msra.mxu0 0
        %848 = vmatprep.subr.bf16.mxu0 0
        %849 = vmatpush1.bf16.msra.mxu0 0
        %850 = vmatprep.mubr.bf16.mxu0 0
        %851 = vmatmul.mubr.bf16.gmra.mrb[0].mxu0 %v816
        %v852 = vpop.f32.mrb[0].mxu0
        %v853 = vadd.f32 %v787, %v852
        %v854 = vpop.f32.mrb[0].mxu0
        %v855 = vadd.f32 %v791, %v854
        %v856 = vpop.f32.mrb[0].mxu0
        %v857 = vpop.f32.mrb[0].mxu0
        %858 = vdwg.mxu0
        %v859 = vlaneseq
        %v860 = vshrl.u32 %v859, 7
        %v861 = vlaneseq
        %v862 = vand.u32 %v861, 127
        %vm863 = vcmp.le.s32.totalorder %v862, %v860
        %v864 = vmul.f32 %v853, 0.17677669
        %v865 = vpack.c.bf16 %v864, %v864
        %v866 = vpack.c.bf16 %v853, %v853
        %868 = vrot.lane.b32.xlu0 %v866, 96
        %v869 = vpop.permute.xlu0 %868
        %v871 = vsel %vm814, %v865, 0
        %v874 = vsel %vm814, %v869, 0
        %876 = vmatprep.subr.bf16.mxu0 0
        %877 = vmatpush1.bf16.xpose.msra.mxu0 %v874
        %878 = vmatprep.subr.bf16.mxu0 0
        %879 = vmatpush1.bf16.xpose.msra.mxu0 0
        %880 = vmatprep.subr.bf16.mxu0 0
        %881 = vmatpush1.bf16.xpose.msra.mxu0 0
        %882 = vmatprep.subr.bf16.mxu0 0
        %883 = vmatpush1.bf16.xpose.msra.mxu0 0
        %884 = vmatprep.subr.bf16.mxu0 0
        %885 = vmatpush1.bf16.xpose.msra.mxu0 0
        %886 = vmatprep.subr.bf16.mxu0 0
        %887 = vmatpush1.bf16.xpose.msra.mxu0 0
        %888 = vmatprep.subr.bf16.mxu0 0
        %889 = vmatpush1.bf16.xpose.msra.mxu0 0
        %890 = vmatprep.subr.bf16.mxu0 0
        %891 = vmatpush1.bf16.xpose.msra.mxu0 0
        %892 = vmatprep.subr.bf16.mxu0 0
        %893 = vmatpush1.bf16.xpose.msra.mxu0 0
        %894 = vmatprep.subr.bf16.mxu0 0
        %895 = vmatpush1.bf16.xpose.msra.mxu0 0
        %896 = vmatprep.subr.bf16.mxu0 0
        %897 = vmatpush1.bf16.xpose.msra.mxu0 0
        %898 = vmatprep.subr.bf16.mxu0 0
        %899 = vmatpush1.bf16.xpose.msra.mxu0 0
        %900 = vmatprep.subr.bf16.mxu0 0
        %901 = vmatpush1.bf16.xpose.msra.mxu0 0
        %902 = vmatprep.subr.bf16.mxu0 0
        %903 = vmatpush1.bf16.xpose.msra.mxu0 0
        %904 = vmatprep.subr.bf16.mxu0 0
        %905 = vmatpush1.bf16.xpose.msra.mxu0 0
        %906 = vmatprep.subr.bf16.mxu0 0
        %907 = vmatpush1.bf16.xpose.msra.mxu0 0
        %908 = vmatprep.mubr.bf16.mxu0 0
        %909 = vmatmul.mubr.bf16.gmra.mrb[0].mxu0 %v871
        %v910 = vpop.f32.mrb[0].mxu0
        %v911 = vadd.f32 0.0, %v910
        %v912 = vpop.f32.mrb[0].mxu0
        %v913 = vpop.f32.mrb[0].mxu0
        %v914 = vpop.f32.mrb[0].mxu0
        %915 = vdwg.mxu0
        %v916 = vsel %vm863, %v911, -1e+30
        %vm917 = vcmask 64512
        %v918 = vsel %vm917, %v916, -inf
        %919 = vmax.xlane.f32.xlu0 %v918
        %v920 = vpop.xlane.xlu0 %919
        %v921 = vsub.f32 %v916, %v920
        %v922 = vmul.f32 %v921, 1.442695
        %v923 = vpow.pop %v922
        %v924 = vsel %vm917, %v923, 0.0
        %925 = vadd.xlane.f32.xlu0 %v924
        %v926 = vpop.xlane.xlu0 %925
        %v927 = vrcp.pop %v926
        %v928 = vmul.f32 %v923, %v927
        %v929 = vpack.c.bf16 %v928, %v928
        %930 = vrot.lane.b32.xlu0 %v866, 64
        %v931 = vpop.permute.xlu0 %930
        %v933 = vsel %vm917, %v929, 0
        %vm935 = vcmask 1043456
        %v937 = vsel %vm935, %v931, 0
        %939 = vmatprep.subr.bf16.mxu0 0
        %940 = vmatpush1.bf16.msra.mxu0 %v937
        %941 = vmatprep.subr.bf16.mxu0 0
        %942 = vmatpush1.bf16.msra.mxu0 0
        %943 = vmatprep.subr.bf16.mxu0 0
        %944 = vmatpush1.bf16.msra.mxu0 0
        %945 = vmatprep.subr.bf16.mxu0 0
        %946 = vmatpush1.bf16.msra.mxu0 0
        %947 = vmatprep.subr.bf16.mxu0 0
        %948 = vmatpush1.bf16.msra.mxu0 0
        %949 = vmatprep.subr.bf16.mxu0 0
        %950 = vmatpush1.bf16.msra.mxu0 0
        %951 = vmatprep.subr.bf16.mxu0 0
        %952 = vmatpush1.bf16.msra.mxu0 0
        %953 = vmatprep.subr.bf16.mxu0 0
        %954 = vmatpush1.bf16.msra.mxu0 0
        %955 = vmatprep.subr.bf16.mxu0 0
        %956 = vmatpush1.bf16.msra.mxu0 0
        %957 = vmatprep.subr.bf16.mxu0 0
        %958 = vmatpush1.bf16.msra.mxu0 0
        %959 = vmatprep.subr.bf16.mxu0 0
        %960 = vmatpush1.bf16.msra.mxu0 0
        %961 = vmatprep.subr.bf16.mxu0 0
        %962 = vmatpush1.bf16.msra.mxu0 0
        %963 = vmatprep.subr.bf16.mxu0 0
        %964 = vmatpush1.bf16.msra.mxu0 0
        %965 = vmatprep.subr.bf16.mxu0 0
        %966 = vmatpush1.bf16.msra.mxu0 0
        %967 = vmatprep.subr.bf16.mxu0 0
        %968 = vmatpush1.bf16.msra.mxu0 0
        %969 = vmatprep.subr.bf16.mxu0 0
        %970 = vmatpush1.bf16.msra.mxu0 0
        %971 = vmatprep.mubr.bf16.mxu0 0
        %972 = vmatmul.mubr.bf16.gmra.mrb[0].mxu0 %v933
        %v973 = vpop.f32.mrb[0].mxu0
        %v974 = vadd.f32 0.0, %v973
        %v975 = vpop.f32.mrb[0].mxu0
        %v976 = vpop.f32.mrb[0].mxu0
        %v977 = vpop.f32.mrb[0].mxu0
        %978 = vdwg.mxu0
        %v979 = vadd.f32 %v776, %v974
        %v980 = vsel %vm814, %v979, 0.0
        %981 = vadd.xlane.f32.xlu0 %v980
        %v982 = vpop.xlane.xlu0 %981
        %v983 = vrcp.pop 32.0
        %v984 = vmul.f32 %v982, %v983
        %v985 = vsub.f32 %v979, %v984
        %v986 = vmul.f32 %v985, %v985
        %v987 = vsel %vm814, %v986, 0.0
        %988 = vadd.xlane.f32.xlu0 %v987
        %v989 = vpop.xlane.xlu0 %988
        %v990 = vmul.f32 %v989, %v983
        %v991 = vadd.f32 %v990, 1e-05
        %v992 = vrsqrt.pop %v991
        %v993 = vmul.f32 %v985, %v992
        %v995 = vlaneseq
        %v996 = vshrl.u32 %v995, 7
        %v997 = vsub.s32 0, %v996
        %v998 = vrot.slane %v748, %v997
        %v1000 = vmul.f32 %v993, %v998
        %v1002 = vlaneseq
        %v1003 = vshrl.u32 %v1002, 7
        %v1004 = vsub.s32 0, %v1003
        %v1005 = vrot.slane %v749, %v1004
        %v1007 = vadd.f32 %v1000, %v1005
        %v1008 = vpack.c.bf16 %v1007, %v1007
        %v1010 = vlaneseq
        %v1011 = vshrl.u32 %v1010, 7
        %v1012 = vsub.s32 0, %v1011
        %v1013 = vrot.slane %v754, %v1012
        %v1019 = vunpack.c.l.b16 %v750
        %v1020 = vunpack.c.l.b16 %v751
        %v1021 = vunpack.c.l.b16 %v752
        %v1022 = vunpack.c.l.b16 %v753
        %v1023 = vpack.c.b16 %v1020, %v1019
        %v1024 = vpack.c.b16 %v1022, %v1021
        %v1028 = vsel %vm814, %v1008, 0
        %1030 = vmatprep.subr.bf16.mxu0 0
        %1031 = vmatpush1.bf16.msra.mxu0 %v1023
        %1032 = vmatprep.subr.bf16.mxu0 0
        %1033 = vmatpush1.bf16.msra.mxu0 %v1024
        %1034 = vmatprep.subr.bf16.mxu0 0
        %1035 = vmatpush1.bf16.msra.mxu0 0
        %1036 = vmatprep.subr.bf16.mxu0 0
        %1037 = vmatpush1.bf16.msra.mxu0 0
        %1038 = vmatprep.subr.bf16.mxu0 0
        %1039 = vmatpush1.bf16.msra.mxu0 0
        %1040 = vmatprep.subr.bf16.mxu0 0
        %1041 = vmatpush1.bf16.msra.mxu0 0
        %1042 = vmatprep.subr.bf16.mxu0 0
        %1043 = vmatpush1.bf16.msra.mxu0 0
        %1044 = vmatprep.subr.bf16.mxu0 0
        %1045 = vmatpush1.bf16.msra.mxu0 0
        %1046 = vmatprep.subr.bf16.mxu0 0
        %1047 = vmatpush1.bf16.msra.mxu0 0
        %1048 = vmatprep.subr.bf16.mxu0 0
        %1049 = vmatpush1.bf16.msra.mxu0 0
        %1050 = vmatprep.subr.bf16.mxu0 0
        %1051 = vmatpush1.bf16.msra.mxu0 0
        %1052 = vmatprep.subr.bf16.mxu0 0
        %1053 = vmatpush1.bf16.msra.mxu0 0
        %1054 = vmatprep.subr.bf16.mxu0 0
        %1055 = vmatpush1.bf16.msra.mxu0 0
        %1056 = vmatprep.subr.bf16.mxu0 0
        %1057 = vmatpush1.bf16.msra.mxu0 0
        %1058 = vmatprep.subr.bf16.mxu0 0
        %1059 = vmatpush1.bf16.msra.mxu0 0
        %1060 = vmatprep.subr.bf16.mxu0 0
        %1061 = vmatpush1.bf16.msra.mxu0 0
        %1062 = vmatprep.mubr.bf16.mxu0 0
        %1063 = vmatmul.mubr.bf16.gmra.mrb[0].mxu0 %v1028
        %v1064 = vpop.f32.mrb[0].mxu0
        %v1065 = vadd.f32 %v1013, %v1064
        %v1066 = vpop.f32.mrb[0].mxu0
        %v1067 = vpop.f32.mrb[0].mxu0
        %v1068 = vpop.f32.mrb[0].mxu0
        %1069 = vdwg.mxu0
        %v1070 = vmul.f32 %v1065, 0.5
        %v1071 = vmul.f32 %v1065, 0.70710677
        %v1072 = verf.f32.pop %v1071
        %v1073 = vadd.f32 %v1072, 1.0
        %v1074 = vmul.f32 %v1070, %v1073
        %v1075 = vpack.c.bf16 %v1074, %v1074
        %v1077 = vlaneseq
        %v1078 = vshrl.u32 %v1077, 7
        %v1079 = vsub.s32 0, %v1078
        %v1080 = vrot.slane %v759, %v1079
        %v1086 = vunpack.c.l.b16 %v755
        %v1087 = vunpack.c.l.b16 %v756
        %v1088 = vunpack.c.l.b16 %v757
        %v1089 = vunpack.c.l.b16 %v758
        %v1090 = vpack.c.b16 %v1087, %v1086
        %v1091 = vpack.c.b16 %v1089, %v1088
        %v1095 = vsel %vm814, %v1075, 0
        %1097 = vmatprep.subr.bf16.mxu0 0
        %1098 = vmatpush1.bf16.msra.mxu0 %v1090
        %1099 = vmatprep.subr.bf16.mxu0 0
        %1100 = vmatpush1.bf16.msra.mxu0 %v1091
        %1101 = vmatprep.subr.bf16.mxu0 0
        %1102 = vmatpush1.bf16.msra.mxu0 0
        %1103 = vmatprep.subr.bf16.mxu0 0
        %1104 = vmatpush1.bf16.msra.mxu0 0
        %1105 = vmatprep.subr.bf16.mxu0 0
        %1106 = vmatpush1.bf16.msra.mxu0 0
        %1107 = vmatprep.subr.bf16.mxu0 0
        %1108 = vmatpush1.bf16.msra.mxu0 0
        %1109 = vmatprep.subr.bf16.mxu0 0
        %1110 = vmatpush1.bf16.msra.mxu0 0
        %1111 = vmatprep.subr.bf16.mxu0 0
        %1112 = vmatpush1.bf16.msra.mxu0 0
        %1113 = vmatprep.subr.bf16.mxu0 0
        %1114 = vmatpush1.bf16.msra.mxu0 0
        %1115 = vmatprep.subr.bf16.mxu0 0
        %1116 = vmatpush1.bf16.msra.mxu0 0
        %1117 = vmatprep.subr.bf16.mxu0 0
        %1118 = vmatpush1.bf16.msra.mxu0 0
        %1119 = vmatprep.subr.bf16.mxu0 0
        %1120 = vmatpush1.bf16.msra.mxu0 0
        %1121 = vmatprep.subr.bf16.mxu0 0
        %1122 = vmatpush1.bf16.msra.mxu0 0
        %1123 = vmatprep.subr.bf16.mxu0 0
        %1124 = vmatpush1.bf16.msra.mxu0 0
        %1125 = vmatprep.subr.bf16.mxu0 0
        %1126 = vmatpush1.bf16.msra.mxu0 0
        %1127 = vmatprep.subr.bf16.mxu0 0
        %1128 = vmatpush1.bf16.msra.mxu0 0
        %1129 = vmatprep.mubr.bf16.mxu0 0
        %1130 = vmatmul.mubr.bf16.gmra.mrb[0].mxu0 %v1095
        %v1131 = vpop.f32.mrb[0].mxu0
        %v1132 = vadd.f32 %v1080, %v1131
        %v1133 = vpop.f32.mrb[0].mxu0
        %v1134 = vpop.f32.mrb[0].mxu0
        %v1135 = vpop.f32.mrb[0].mxu0
        %1136 = vdwg.mxu0
        %v1137 = vadd.f32 %v1007, %v1132
        %v1138 = vsel %vm814, %v1137, 0.0
        %1139 = vadd.xlane.f32.xlu0 %v1138
        %v1140 = vpop.xlane.xlu0 %1139
        %v1141 = vmul.f32 %v1140, %v983
        %v1142 = vsub.f32 %v1137, %v1141
        %v1143 = vmul.f32 %v1142, %v1142
        %v1144 = vsel %vm814, %v1143, 0.0
        %1145 = vadd.xlane.f32.xlu0 %v1144
        %v1146 = vpop.xlane.xlu0 %1145
        %v1147 = vmul.f32 %v1146, %v983
        %v1148 = vadd.f32 %v1147, 1e-05
        %v1149 = vrsqrt.pop %v1148
        %v1150 = vmul.f32 %v1142, %v1149
        %v1152 = vlaneseq
        %v1153 = vshrl.u32 %v1152, 7
        %v1154 = vsub.s32 0, %v1153
        %v1155 = vrot.slane %v760, %v1154
        %v1157 = vmul.f32 %v1150, %v1155
        %v1159 = vlaneseq
        %v1160 = vshrl.u32 %v1159, 7
        %v1161 = vsub.s32 0, %v1160
        %v1162 = vrot.slane %v761, %v1161
        %v1164 = vadd.f32 %v1157, %v1162
        %v1165 = vxor.u32 %v1164, 2147483648
        %v1166 = vmul.f32 %v1165, 1.442695
        %v1167 = vpow.pop %v1166
        %v1168 = vadd.f32 %v1167, 1.0
        %v1169 = vrcp.pop %v1168
        %v1170 = vmul.f32 1.0, %v1169
        %vm1171 = vcmp.ge.s32.totalorder %v862, %v860
        %v1172 = vpack.c.bf16 %v855, %v855
        %1174 = vrot.lane.b32.xlu0 %v865, 32
        %v1175 = vpop.permute.xlu0 %1174
        %v1177 = vsel %vm814, %v1175, 0
        %v1180 = vsel %vm814, %v1172, 0
        %1182 = vmatprep.subr.bf16.mxu0 0
        %1183 = vmatpush1.bf16.xpose.msra.mxu0 %v1180
        %1184 = vmatprep.subr.bf16.mxu0 0
        %1185 = vmatpush1.bf16.xpose.msra.mxu0 0
        %1186 = vmatprep.subr.bf16.mxu0 0
        %1187 = vmatpush1.bf16.xpose.msra.mxu0 0
        %1188 = vmatprep.subr.bf16.mxu0 0
        %1189 = vmatpush1.bf16.xpose.msra.mxu0 0
        %1190 = vmatprep.subr.bf16.mxu0 0
        %1191 = vmatpush1.bf16.xpose.msra.mxu0 0
        %1192 = vmatprep.subr.bf16.mxu0 0
        %1193 = vmatpush1.bf16.xpose.msra.mxu0 0
        %1194 = vmatprep.subr.bf16.mxu0 0
        %1195 = vmatpush1.bf16.xpose.msra.mxu0 0
        %1196 = vmatprep.subr.bf16.mxu0 0
        %1197 = vmatpush1.bf16.xpose.msra.mxu0 0
        %1198 = vmatprep.subr.bf16.mxu0 0
        %1199 = vmatpush1.bf16.xpose.msra.mxu0 0
        %1200 = vmatprep.subr.bf16.mxu0 0
        %1201 = vmatpush1.bf16.xpose.msra.mxu0 0
        %1202 = vmatprep.subr.bf16.mxu0 0
        %1203 = vmatpush1.bf16.xpose.msra.mxu0 0
        %1204 = vmatprep.subr.bf16.mxu0 0
        %1205 = vmatpush1.bf16.xpose.msra.mxu0 0
        %1206 = vmatprep.subr.bf16.mxu0 0
        %1207 = vmatpush1.bf16.xpose.msra.mxu0 0
        %1208 = vmatprep.subr.bf16.mxu0 0
        %1209 = vmatpush1.bf16.xpose.msra.mxu0 0
        %1210 = vmatprep.subr.bf16.mxu0 0
        %1211 = vmatpush1.bf16.xpose.msra.mxu0 0
        %1212 = vmatprep.subr.bf16.mxu0 0
        %1213 = vmatpush1.bf16.xpose.msra.mxu0 0
        %1214 = vmatprep.mubr.bf16.mxu0 0
        %1215 = vmatmul.mubr.bf16.gmra.mrb[0].mxu0 %v1177
        %v1216 = vpop.f32.mrb[0].mxu0
        %v1217 = vadd.f32 0.0, %v1216
        %v1218 = vpop.f32.mrb[0].mxu0
        %v1219 = vpop.f32.mrb[0].mxu0
        %v1220 = vpop.f32.mrb[0].mxu0
        %1221 = vdwg.mxu0
        %v1222 = vsel %vm1171, %v1217, -1e+30
        %v1223 = vsel %vm917, %v1222, -inf
        %1224 = vmax.xlane.f32.xlu0 %v1223
        %v1225 = vpop.xlane.xlu0 %1224
        %v1226 = vsub.f32 %v1222, %v1225
        %v1227 = vmul.f32 %v1226, 1.442695
        %v1228 = vpow.pop %v1227
        %v1229 = vsel %vm917, %v1228, 0.0
        %1230 = vadd.xlane.f32.xlu0 %v1229
        %v1231 = vpop.xlane.xlu0 %1230
        %v1232 = vrcp.pop %v1231
        %v1233 = vmul.f32 %v1228, %v1232
        %v1234 = vpack.c.bf16 %v1233, %v1233
        %1236 = vrot.lane.b32.xlu0 %v1172, 96
        %v1237 = vpop.permute.xlu0 %1236
        %v1239 = vsel %vm917, %v1234, 0
        %v1242 = vsel %vm935, %v1237, 0
        %1244 = vmatprep.subr.bf16.mxu0 0
        %1245 = vmatpush1.bf16.msra.mxu0 %v1242
        %1246 = vmatprep.subr.bf16.mxu0 0
        %1247 = vmatpush1.bf16.msra.mxu0 0
        %1248 = vmatprep.subr.bf16.mxu0 0
        %1249 = vmatpush1.bf16.msra.mxu0 0
        %1250 = vmatprep.subr.bf16.mxu0 0
        %1251 = vmatpush1.bf16.msra.mxu0 0
        %1252 = vmatprep.subr.bf16.mxu0 0
        %1253 = vmatpush1.bf16.msra.mxu0 0
        %1254 = vmatprep.subr.bf16.mxu0 0
        %1255 = vmatpush1.bf16.msra.mxu0 0
        %1256 = vmatprep.subr.bf16.mxu0 0
        %1257 = vmatpush1.bf16.msra.mxu0 0
        %1258 = vmatprep.subr.bf16.mxu0 0
        %1259 = vmatpush1.bf16.msra.mxu0 0
        %1260 = vmatprep.subr.bf16.mxu0 0
        %1261 = vmatpush1.bf16.msra.mxu0 0
        %1262 = vmatprep.subr.bf16.mxu0 0
        %1263 = vmatpush1.bf16.msra.mxu0 0
        %1264 = vmatprep.subr.bf16.mxu0 0
        %1265 = vmatpush1.bf16.msra.mxu0 0
        %1266 = vmatprep.subr.bf16.mxu0 0
        %1267 = vmatpush1.bf16.msra.mxu0 0
        %1268 = vmatprep.subr.bf16.mxu0 0
        %1269 = vmatpush1.bf16.msra.mxu0 0
        %1270 = vmatprep.subr.bf16.mxu0 0
        %1271 = vmatpush1.bf16.msra.mxu0 0
        %1272 = vmatprep.subr.bf16.mxu0 0
        %1273 = vmatpush1.bf16.msra.mxu0 0
        %1274 = vmatprep.subr.bf16.mxu0 0
        %1275 = vmatpush1.bf16.msra.mxu0 0
        %1276 = vmatprep.mubr.bf16.mxu0 0
        %1277 = vmatmul.mubr.bf16.gmra.mrb[0].mxu0 %v1239
        %v1278 = vpop.f32.mrb[0].mxu0
        %v1279 = vadd.f32 0.0, %v1278
        %v1280 = vpop.f32.mrb[0].mxu0
        %v1281 = vpop.f32.mrb[0].mxu0
        %v1282 = vpop.f32.mrb[0].mxu0
        %1283 = vdwg.mxu0
        %v1284 = vadd.f32 %v776, %v1279
        %v1285 = vsel %vm814, %v1284, 0.0
        %1286 = vadd.xlane.f32.xlu0 %v1285
        %v1287 = vpop.xlane.xlu0 %1286
        %v1288 = vmul.f32 %v1287, %v983
        %v1289 = vsub.f32 %v1284, %v1288
        %v1290 = vmul.f32 %v1289, %v1289
        %v1291 = vsel %vm814, %v1290, 0.0
        %1292 = vadd.xlane.f32.xlu0 %v1291
        %v1293 = vpop.xlane.xlu0 %1292
        %v1294 = vmul.f32 %v1293, %v983
        %v1295 = vadd.f32 %v1294, 1e-05
        %v1296 = vrsqrt.pop %v1295
        %v1297 = vmul.f32 %v1289, %v1296
        %v1299 = vlaneseq
        %v1300 = vshrl.u32 %v1299, 7
        %v1301 = vsub.s32 0, %v1300
        %v1302 = vrot.slane %v762, %v1301
        %v1304 = vmul.f32 %v1297, %v1302
        %v1306 = vlaneseq
        %v1307 = vshrl.u32 %v1306, 7
        %v1308 = vsub.s32 0, %v1307
        %v1309 = vrot.slane %v763, %v1308
        %v1311 = vadd.f32 %v1304, %v1309
        %v1312 = vpack.c.bf16 %v1311, %v1311
        %v1314 = vlaneseq
        %v1315 = vshrl.u32 %v1314, 7
        %v1316 = vsub.s32 0, %v1315
        %v1317 = vrot.slane %v768, %v1316
        %v1323 = vunpack.c.l.b16 %v764
        %v1324 = vunpack.c.l.b16 %v765
        %v1325 = vunpack.c.l.b16 %v766
        %v1326 = vunpack.c.l.b16 %v767
        %v1327 = vpack.c.b16 %v1324, %v1323
        %v1328 = vpack.c.b16 %v1326, %v1325
        %v1332 = vsel %vm814, %v1312, 0
        %1334 = vmatprep.subr.bf16.mxu0 0
        %1335 = vmatpush1.bf16.msra.mxu0 %v1327
        %1336 = vmatprep.subr.bf16.mxu0 0
        %1337 = vmatpush1.bf16.msra.mxu0 %v1328
        %1338 = vmatprep.subr.bf16.mxu0 0
        %1339 = vmatpush1.bf16.msra.mxu0 0
        %1340 = vmatprep.subr.bf16.mxu0 0
        %1341 = vmatpush1.bf16.msra.mxu0 0
        %1342 = vmatprep.subr.bf16.mxu0 0
        %1343 = vmatpush1.bf16.msra.mxu0 0
        %1344 = vmatprep.subr.bf16.mxu0 0
        %1345 = vmatpush1.bf16.msra.mxu0 0
        %1346 = vmatprep.subr.bf16.mxu0 0
        %1347 = vmatpush1.bf16.msra.mxu0 0
        %1348 = vmatprep.subr.bf16.mxu0 0
        %1349 = vmatpush1.bf16.msra.mxu0 0
        %1350 = vmatprep.subr.bf16.mxu0 0
        %1351 = vmatpush1.bf16.msra.mxu0 0
        %1352 = vmatprep.subr.bf16.mxu0 0
        %1353 = vmatpush1.bf16.msra.mxu0 0
        %1354 = vmatprep.subr.bf16.mxu0 0
        %1355 = vmatpush1.bf16.msra.mxu0 0
        %1356 = vmatprep.subr.bf16.mxu0 0
        %1357 = vmatpush1.bf16.msra.mxu0 0
        %1358 = vmatprep.subr.bf16.mxu0 0
        %1359 = vmatpush1.bf16.msra.mxu0 0
        %1360 = vmatprep.subr.bf16.mxu0 0
        %1361 = vmatpush1.bf16.msra.mxu0 0
        %1362 = vmatprep.subr.bf16.mxu0 0
        %1363 = vmatpush1.bf16.msra.mxu0 0
        %1364 = vmatprep.subr.bf16.mxu0 0
        %1365 = vmatpush1.bf16.msra.mxu0 0
        %1366 = vmatprep.mubr.bf16.mxu0 0
        %1367 = vmatmul.mubr.bf16.gmra.mrb[0].mxu0 %v1332
        %v1368 = vpop.f32.mrb[0].mxu0
        %v1369 = vadd.f32 %v1317, %v1368
        %v1370 = vpop.f32.mrb[0].mxu0
        %v1371 = vpop.f32.mrb[0].mxu0
        %v1372 = vpop.f32.mrb[0].mxu0
        %1373 = vdwg.mxu0
        %v1374 = vmul.f32 %v1369, 0.5
        %v1375 = vmul.f32 %v1369, 0.70710677
        %v1376 = verf.f32.pop %v1375
        %v1377 = vadd.f32 %v1376, 1.0
        %v1378 = vmul.f32 %v1374, %v1377
        %v1379 = vpack.c.bf16 %v1378, %v1378
        %v1381 = vlaneseq
        %v1382 = vshrl.u32 %v1381, 7
        %v1383 = vsub.s32 0, %v1382
        %v1384 = vrot.slane %v773, %v1383
        %v1390 = vunpack.c.l.b16 %v769
        %v1391 = vunpack.c.l.b16 %v770
        %v1392 = vunpack.c.l.b16 %v771
        %v1393 = vunpack.c.l.b16 %v772
        %v1394 = vpack.c.b16 %v1391, %v1390
        %v1395 = vpack.c.b16 %v1393, %v1392
        %v1399 = vsel %vm814, %v1379, 0
        %1401 = vmatprep.subr.bf16.mxu0 0
        %1402 = vmatpush1.bf16.msra.mxu0 %v1394
        %1403 = vmatprep.subr.bf16.mxu0 0
        %1404 = vmatpush1.bf16.msra.mxu0 %v1395
        %1405 = vmatprep.subr.bf16.mxu0 0
        %1406 = vmatpush1.bf16.msra.mxu0 0
        %1407 = vmatprep.subr.bf16.mxu0 0
        %1408 = vmatpush1.bf16.msra.mxu0 0
        %1409 = vmatprep.subr.bf16.mxu0 0
        %1410 = vmatpush1.bf16.msra.mxu0 0
        %1411 = vmatprep.subr.bf16.mxu0 0
        %1412 = vmatpush1.bf16.msra.mxu0 0
        %1413 = vmatprep.subr.bf16.mxu0 0
        %1414 = vmatpush1.bf16.msra.mxu0 0
        %1415 = vmatprep.subr.bf16.mxu0 0
        %1416 = vmatpush1.bf16.msra.mxu0 0
        %1417 = vmatprep.subr.bf16.mxu0 0
        %1418 = vmatpush1.bf16.msra.mxu0 0
        %1419 = vmatprep.subr.bf16.mxu0 0
        %1420 = vmatpush1.bf16.msra.mxu0 0
        %1421 = vmatprep.subr.bf16.mxu0 0
        %1422 = vmatpush1.bf16.msra.mxu0 0
        %1423 = vmatprep.subr.bf16.mxu0 0
        %1424 = vmatpush1.bf16.msra.mxu0 0
        %1425 = vmatprep.subr.bf16.mxu0 0
        %1426 = vmatpush1.bf16.msra.mxu0 0
        %1427 = vmatprep.subr.bf16.mxu0 0
        %1428 = vmatpush1.bf16.msra.mxu0 0
        %1429 = vmatprep.subr.bf16.mxu0 0
        %1430 = vmatpush1.bf16.msra.mxu0 0
        %1431 = vmatprep.subr.bf16.mxu0 0
        %1432 = vmatpush1.bf16.msra.mxu0 0
        %1433 = vmatprep.mubr.bf16.mxu0 0
        %1434 = vmatmul.mubr.bf16.gmra.mrb[0].mxu0 %v1399
        %v1435 = vpop.f32.mrb[0].mxu0
        %v1436 = vadd.f32 %v1384, %v1435
        %v1437 = vpop.f32.mrb[0].mxu0
        %v1438 = vpop.f32.mrb[0].mxu0
        %v1439 = vpop.f32.mrb[0].mxu0
        %1440 = vdwg.mxu0
        %v1441 = vadd.f32 %v1311, %v1436
        %v1442 = vsel %vm814, %v1441, 0.0
        %1443 = vadd.xlane.f32.xlu0 %v1442
        %v1444 = vpop.xlane.xlu0 %1443
        %v1445 = vmul.f32 %v1444, %v983
        %v1446 = vsub.f32 %v1441, %v1445
        %v1447 = vmul.f32 %v1446, %v1446
        %v1448 = vsel %vm814, %v1447, 0.0
        %1449 = vadd.xlane.f32.xlu0 %v1448
        %v1450 = vpop.xlane.xlu0 %1449
        %v1451 = vmul.f32 %v1450, %v983
        %v1452 = vadd.f32 %v1451, 1e-05
        %v1453 = vrsqrt.pop %v1452
        %v1454 = vmul.f32 %v1446, %v1453
        %v1456 = vlaneseq
        %v1457 = vshrl.u32 %v1456, 7
        %v1458 = vsub.s32 0, %v1457
        %v1459 = vrot.slane %v774, %v1458
        %v1461 = vmul.f32 %v1454, %v1459
        %v1463 = vlaneseq
        %v1464 = vshrl.u32 %v1463, 7
        %v1465 = vsub.s32 0, %v1464
        %v1466 = vrot.slane %v775, %v1465
        %v1468 = vadd.f32 %v1461, %v1466
        %v1469 = vxor.u32 %v1468, 2147483648
        %v1470 = vmul.f32 %v1469, 1.442695
        %v1471 = vpow.pop %v1470
        %v1472 = vadd.f32 %v1471, 1.0
        %v1473 = vrcp.pop %v1472
        %v1474 = vmul.f32 1.0, %v1473
        %v1475 = vpack.c.bf16 %v1170, %v1170
        %v1476 = vpack.c.bf16 %v1474, %v1474
        %v1478 = vsel %vm814, %v1475, 0
        %v1481 = vsel %vm814, %v1476, 0
        %1483 = vmatprep.subr.bf16.mxu0 0
        %1484 = vmatpush1.bf16.xpose.msra.mxu0 %v1481
        %1485 = vmatprep.subr.bf16.mxu0 0
        %1486 = vmatpush1.bf16.xpose.msra.mxu0 0
        %1487 = vmatprep.subr.bf16.mxu0 0
        %1488 = vmatpush1.bf16.xpose.msra.mxu0 0
        %1489 = vmatprep.subr.bf16.mxu0 0
        %1490 = vmatpush1.bf16.xpose.msra.mxu0 0
        %1491 = vmatprep.subr.bf16.mxu0 0
        %1492 = vmatpush1.bf16.xpose.msra.mxu0 0
        %1493 = vmatprep.subr.bf16.mxu0 0
        %1494 = vmatpush1.bf16.xpose.msra.mxu0 0
        %1495 = vmatprep.subr.bf16.mxu0 0
        %1496 = vmatpush1.bf16.xpose.msra.mxu0 0
        %1497 = vmatprep.subr.bf16.mxu0 0
        %1498 = vmatpush1.bf16.xpose.msra.mxu0 0
        %1499 = vmatprep.subr.bf16.mxu0 0
        %1500 = vmatpush1.bf16.xpose.msra.mxu0 0
        %1501 = vmatprep.subr.bf16.mxu0 0
        %1502 = vmatpush1.bf16.xpose.msra.mxu0 0
        %1503 = vmatprep.subr.bf16.mxu0 0
        %1504 = vmatpush1.bf16.xpose.msra.mxu0 0
        %1505 = vmatprep.subr.bf16.mxu0 0
        %1506 = vmatpush1.bf16.xpose.msra.mxu0 0
        %1507 = vmatprep.subr.bf16.mxu0 0
        %1508 = vmatpush1.bf16.xpose.msra.mxu0 0
        %1509 = vmatprep.subr.bf16.mxu0 0
        %1510 = vmatpush1.bf16.xpose.msra.mxu0 0
        %1511 = vmatprep.subr.bf16.mxu0 0
        %1512 = vmatpush1.bf16.xpose.msra.mxu0 0
        %1513 = vmatprep.subr.bf16.mxu0 0
        %1514 = vmatpush1.bf16.xpose.msra.mxu0 0
        %1515 = vmatprep.mubr.bf16.mxu0 0
        %1516 = vmatmul.mubr.bf16.gmra.mrb[0].mxu0 %v1478
        %v1517 = vpop.f32.mrb[0].mxu0
        %v1518 = vadd.f32 0.0, %v1517
        %v1519 = vpop.f32.mrb[0].mxu0
        %v1520 = vpop.f32.mrb[0].mxu0
        %v1521 = vpop.f32.mrb[0].mxu0
        %1522 = vdwg.mxu0
        %v1523 = vmul.f32 %v1518, 0.03125
        %1524 = vst.msk [vmem:[%s746] sm:$0xff] %vm917, %v1523
        %s1525 = sand.u32 %s453, 1
        %s1526 = scalar_lea.sflag [#allocation4], %s1525
        %s1527 = sand.u32 %s453, 1
        %s1528 = smul.addr %s1527, 8
        %s1529 = scalar_lea.vmem [#allocation20], %s1528
        // Predicated region
        $region141: #{tpu_custom_call.1} parent=95 // pred_check
          %p1530 = pneg %p463
        $region142: #{tpu_custom_call.1} parent=95 // pred_check_branch
          %1532 = sbr.rel (%p1530) target = $region144
        $region143: #{tpu_custom_call.1} parent=95 // pred_region
          %s1534 = ssub.s32 128, 128
          %1535 = vsyncadd %s1526, %s1534
          %s1536 = smul.addr %s41, 128
          %s1537 = scalar_lea.hbm %s19, %s1536
          %s1539 = sshll.u32 %s1529, 4
          %s1540 = int_to_ptr.vmem [resolvable:$true] %s1539
          %1542 = dma.vmem_to_hbm [thread:$0]  %s1540, 128, %s1537, %s1526
        $region144: #{tpu_custom_call.1} parent=95 // pred_fallthru
          _
      $region96: #{tpu_custom_call.1} parent=5 // pred_fallthru
        _
      %p1543 = scmp.le.s32.totalorder 2, %s36
      // Predicated region
      $region145: #{tpu_custom_call.1} parent=5 // pred_check
        %p1544 = pneg %p1543
      $region146: #{tpu_custom_call.1} parent=5 // pred_check_branch
        %1546 = sbr.rel (%p1544) target = $region148
      $region147: #{tpu_custom_call.1} parent=5 // pred_region
        %s1547 = ssub.s32 %s36, 2
        // Predicated region
        $region149: #{tpu_custom_call.1} parent=147 // pred_check
          %p1548 = pneg %p469
        $region150: #{tpu_custom_call.1} parent=147 // pred_check_branch
          %1550 = sbr.rel (%p1548) target = $region152
        $region151: #{tpu_custom_call.1} parent=147 // pred_region
          %s1551 = sand.u32 %s454, 1
          %s1552 = scalar_lea.sflag [#allocation4], %s1551
          %s1553 = sand.u32 %s454, 1
          %s1554 = smul.addr %s1553, 8
          %s1555 = scalar_lea.vmem [#allocation20], %s1554
          %1556 = dma.done %s1552, 128
        $region152: #{tpu_custom_call.1} parent=147 // pred_fallthru
          _
      $region148: #{tpu_custom_call.1} parent=5 // pred_fallthru
        _
    $region6: #{tpu_custom_call.1} parent=1 // loop_footer
      %s40 = sadd.s32 1, %s36
    $region7: #{tpu_custom_call.1} parent=1 // loop_footer_branch
      %35 = sbr.rel target = $region3
    $region8: #{tpu_custom_call.1} parent=1 // loop_exit
      _
    %1557 = vsyncpa [#allocation3], 1
    %s1558 = scalar_lea.sflag [#allocation3], 1
    %1559 = vsyncpa %s1558, 1
    %1560 = vsyncpa [#allocation6], 1
    %1561 = vsyncpa [#allocation9], 1
    %1562 = vsyncpa [#allocation12], 1
    %1563 = vsyncpa [#allocation15], 1
    %1564 = vsyncpa [#allocation18], 1
    %1565 = vsyncpa [#allocation4], 1
    %s1566 = scalar_lea.sflag [#allocation4], 1
    %1567 = vsyncpa %s1566, 1

</llo_original>
